<compile_context>
chip_gen: v7x
topology: tpu7x:2x2x1
jax: 0.10.0
libtpu: 0.0.40
codegen_flags: <defaults>
</compile_context>

<pallas_src>
import functools

import jax
import jax.numpy as jnp
from jax.experimental import pallas as pl
from jax.experimental.pallas import tpu as pltpu

_MASK_NEG = -1e30  # finite "-inf": exp underflows to 0, never produces NaN


def gat_kernel(h_ref, dis_ref, adj_ref, w_ref, asd_ref, u_ref, out_ref,
               *, nb_heads, negative_slope):
    """One block of batch elements per grid step; everything lives in VMEM.

    h_ref : (Bt, N, H)      dis_ref : (Bt, N*N, H)   adj_ref : (Bt, N, N)
    w_ref : (H, H)          asd_ref : (H, 2*heads)   u_ref   : (H, heads)
    out_ref : (Bt, N, H)
    """
    Bt, N, H = h_ref.shape
    F = H // nb_heads

    # ---- dense projections over the whole (Bt*N) slab: 3 MXU matmuls total ----
    h_flat = h_ref[...].reshape(Bt * N, H)
    g_all = jnp.dot(h_flat, w_ref[...], preferred_element_type=jnp.float32)    # [Bt*N, H]
    # per-node source/destination scores for all heads at once
    s_sd = jnp.dot(g_all, asd_ref[...], preferred_element_type=jnp.float32)    # [Bt*N, 2*heads]
    # distance scores with W_e folded into the attention vector (exact)
    dis_flat = dis_ref[...].reshape(Bt * N * N, H)
    s_dis = jnp.dot(dis_flat, u_ref[...], preferred_element_type=jnp.float32)  # [Bt*N*N, heads]
    s_dis = s_dis.reshape(Bt * N, N, nb_heads)  # row b*N+i, col j, head hd (i-major pairs)

    for b in range(Bt):                                   # unrolled, Bt is small
        g_b = g_all[b * N:(b + 1) * N, :]                                # [N, H]
        s_src = s_sd[b * N:(b + 1) * N, :nb_heads]                       # [N, heads] (a1 . g_i)
        s_dst = jnp.transpose(s_sd[b * N:(b + 1) * N, nb_heads:])        # [heads, N] (a2 . g_j)
        s_dis_b = s_dis[b * N:(b + 1) * N]                               # [N, N, heads]
        # adjacency mask as an additive bias, computed once (not per head)
        bias = jnp.where(adj_ref[b] != 0.0, 0.0, _MASK_NEG)              # [N, N]

        head_outs = []
        for hd in range(nb_heads):                        # unrolled, nb_heads is small
            # e[i, j] = leaky_relu(a1.g_i + a2.g_j + a3.(W_e dis_ij)), then mask
            e = (s_src[:, hd:hd + 1]                                     # [N, 1]
                 + s_dst[hd:hd + 1, :]                                   # [1, N]
                 + jnp.sum(s_dis_b[:, :, hd:hd + 1], axis=-1))           # [N, N]
            e = jnp.where(e >= 0, e, negative_slope * e)                 # LeakyReLU
            e = e + bias
            # softmax over j (lane axis)
            m = jnp.max(e, axis=1, keepdims=True)
            p = jnp.exp(e - m)
            l = jnp.sum(p, axis=1, keepdims=True)
            attn = p * pl.reciprocal(l, approx=True)                     # EUP, not VALU divide
            head_outs.append(
                jnp.dot(attn, g_b[:, hd * F:(hd + 1) * F],
                        preferred_element_type=jnp.float32))             # [N, F]

        # single lane-dense [N, H] store per batch element
        out_ref[b] = jnp.concatenate(head_outs, axis=-1)


def _expand_attn_weights(attn_w, nb_heads):
    """attn_w: [3, F] rows (a_src, a_dst, a_dis) -> block-structured [H, nb_heads] mats.

    A[hd*F + f, hd2] = a[f] * (hd == hd2), so g @ A gives the per-head score for all heads.
    """
    F = attn_w.shape[1]
    eye = jnp.eye(nb_heads, dtype=attn_w.dtype)                          # [heads, heads]

    def blockify(vec):
        return (eye[:, None, :] * vec[None, :, None]).reshape(nb_heads * F, nb_heads)

    return blockify(attn_w[0]), blockify(attn_w[1]), blockify(attn_w[2])


def graph_attention_layer(h, dis_mat, adj_mat, w, w_e, attn_w, *, nb_heads,
                          negative_slope=0.2, block_b=None):
    B, N, H = h.shape
    F = H // nb_heads
    assert attn_w.shape == (3, F)
    if block_b is None:
        block_b = next(c for c in (8, 4, 2, 1) if B % c == 0)
    assert B % block_b == 0, "block_b must divide the batch"

    # Precompute (tiny, O(H*heads)) block-structured attention matrices + fold W_e.
    a_src_m, a_dst_m, a_dis_m = _expand_attn_weights(attn_w, nb_heads)
    a_sd = jnp.concatenate([a_src_m, a_dst_m], axis=1)                   # [H, 2*heads]
    u = jnp.dot(w_e, a_dis_m)                                            # [H, heads]

    kernel = functools.partial(gat_kernel, nb_heads=nb_heads,
                               negative_slope=float(negative_slope))

    # Scoped-VMEM sizing: double-buffered blocks + resident weights + headroom,
    # clamped below v7x's 64 MiB physical VMEM.
    # TODO(synk): tile the N*N pair axis (two-pass/online softmax) when the dis
    #             block itself no longer fits VMEM at very large N.
    f32 = 4
    block_bytes = f32 * block_b * (N * H + N * N * H + N * N + N * H)    # h, dis, adj, out
    weight_bytes = f32 * (H * H + H * 3 * nb_heads)
    vmem_limit = int(min(max(2 * block_bytes + weight_bytes + (4 << 20), 32 << 20),
                         56 << 20))

    return pl.pallas_call(
        kernel,
        out_shape=jax.ShapeDtypeStruct((B, N, H), jnp.float32),
        grid_spec=pltpu.PrefetchScalarGridSpec(
            num_scalar_prefetch=0,
            grid=(B // block_b,),
            in_specs=[
                pl.BlockSpec((block_b, N, H), lambda b: (b, 0, 0)),
                pl.BlockSpec((block_b, N * N, H), lambda b: (b, 0, 0)),
                pl.BlockSpec((block_b, N, N), lambda b: (b, 0, 0)),
                pl.BlockSpec((H, H), lambda b: (0, 0)),
                pl.BlockSpec((H, 2 * nb_heads), lambda b: (0, 0)),
                pl.BlockSpec((H, nb_heads), lambda b: (0, 0)),
            ],
            out_specs=pl.BlockSpec((block_b, N, H), lambda b: (b, 0, 0)),
        ),
        compiler_params=pltpu.CompilerParams(
            dimension_semantics=("parallel",),
            vmem_limit_bytes=vmem_limit),
    )(h, dis_mat, adj_mat, w, a_sd, u)


def reference_gat(h, dis_mat, adj_mat, w, w_e, attn_w, *, nb_heads,
                  negative_slope=0.2):
    """Pure-JAX transliteration of the PyTorch forward (for validation)."""
    B, N, H = h.shape
    F = H // nb_heads
    g = (h @ w).reshape(B, N, nb_heads, F)
    g_repeat = jnp.tile(g, (1, N, 1, 1))                 # (i*N+j) -> g[j]
    g_repeat_interleave = jnp.repeat(g, N, axis=1)       # (i*N+j) -> g[i]
    ge = (dis_mat @ w_e).reshape(B, N * N, nb_heads, F)
    g_concat = jnp.concatenate([g_repeat_interleave, g_repeat, ge], axis=-1)
    g_concat = g_concat.reshape(B, N, N, nb_heads, 3 * F)
    attn_full = attn_w.reshape(-1)                       # [3F] = [a_src, a_dst, a_dis]
    e = jnp.einsum('bijhf,f->bijh', g_concat, attn_full)
    e = jnp.where(e >= 0, e, negative_slope * e)
    e = jnp.where(adj_mat[:, :, :, None] != 0, e, -jnp.inf)
    a = jax.nn.softmax(e, axis=2)
    out = jnp.einsum('bijh,bjhf->bihf', a, g)
    return out.reshape(B, N, nb_heads * F)


if __name__ == "__main__":
    B, N = 2, 8
    hidden_dim, nb_heads = 32, 4
    F = hidden_dim // nb_heads

    key = jax.random.PRNGKey(0)
    k_h, k_d, k_a, k_w, k_we, k_at = jax.random.split(key, 6)

    h = jax.random.normal(k_h, (B, N, hidden_dim), dtype=jnp.float32)
    dis_mat = jax.random.normal(k_d, (B, N * N, hidden_dim), dtype=jnp.float32)
    # random adjacency with self-loops so no softmax row is fully masked
    adj_mat = (jax.random.uniform(k_a, (B, N, N)) > 0.5).astype(jnp.float32)
    adj_mat = jnp.clip(adj_mat + jnp.eye(N, dtype=jnp.float32)[None], 0.0, 1.0)

    # deterministic synthetic parameters (shapes from the module's __init__)
    w = 0.1 * jax.random.normal(k_w, (hidden_dim, hidden_dim), dtype=jnp.float32)
    w_e = 0.1 * jax.random.normal(k_we, (hidden_dim, hidden_dim), dtype=jnp.float32)
    attn_w = 0.1 * jax.random.normal(k_at, (3, F), dtype=jnp.float32)

    out = graph_attention_layer(h, dis_mat, adj_mat, w, w_e, attn_w,
                                nb_heads=nb_heads, negative_slope=0.2)
    out = jax.block_until_ready(out)

    ref = reference_gat(h, dis_mat, adj_mat, w, w_e, attn_w,
                        nb_heads=nb_heads, negative_slope=0.2)
    assert out.shape == (B, N, hidden_dim)
    # tolerance accounts for the approximate EUP reciprocal used for softmax normalization
    assert jnp.allclose(out, ref, atol=5e-3, rtol=5e-3), "mismatch vs JAX reference"
    print("KERNEL_OK")
</pallas_src>

<mosaic_0001>
module attributes {stable_mosaic.version = 11 : i64} {
  func.func @gat_kernel(%arg0: i32, %arg1: memref<2x8x32xf32, #tpu.memory_space<vmem>>, %arg2: memref<2x64x32xf32, #tpu.memory_space<vmem>>, %arg3: memref<2x8x8xf32, #tpu.memory_space<vmem>>, %arg4: memref<32x32xf32, #tpu.memory_space<vmem>>, %arg5: memref<32x8xf32, #tpu.memory_space<vmem>>, %arg6: memref<32x4xf32, #tpu.memory_space<vmem>>, %arg7: memref<2x8x32xf32, #tpu.memory_space<vmem>>) attributes {dimension_semantics = [#tpu.dimension_semantics<parallel>], iteration_bounds = array<i64: 1>, scalar_prefetch = 0 : i64, scratch_operands = 0 : i64, tpu.core_type = #tpu.core_type<tc>, window_params = [{transform_indices = @transform_0, window_bounds = array<i64: 2, 8, 32>}, {transform_indices = @transform_1, window_bounds = array<i64: 2, 64, 32>}, {transform_indices = @transform_2, window_bounds = array<i64: 2, 8, 8>}, {pipeline_mode = #tpu.pipeline_mode<synchronous>, transform_indices = @transform_3, window_bounds = array<i64: 32, 32>}, {pipeline_mode = #tpu.pipeline_mode<synchronous>, transform_indices = @transform_4, window_bounds = array<i64: 32, 8>}, {pipeline_mode = #tpu.pipeline_mode<synchronous>, transform_indices = @transform_5, window_bounds = array<i64: 32, 4>}, {transform_indices = @transform_6, window_bounds = array<i64: 2, 8, 32>}]} {
    %c0 = arith.constant 0 : index
    %c0_0 = arith.constant 0 : index
    %c0_1 = arith.constant 0 : index
    %0 = vector.load %arg1[%c0, %c0_0, %c0_1] : memref<2x8x32xf32, #tpu.memory_space<vmem>>, vector<2x8x32xf32>
    %1 = vector.shape_cast %0 : vector<2x8x32xf32> to vector<16x32xf32>
    %c0_2 = arith.constant 0 : index
    %c0_3 = arith.constant 0 : index
    %2 = vector.load %arg4[%c0_2, %c0_3] : memref<32x32xf32, #tpu.memory_space<vmem>>, vector<32x32xf32>
    %cst = arith.constant dense<0.000000e+00> : vector<16x32xf32>
    %3 = tpu.matmul %1, %2, %cst {dimension_numbers = #tpu.dot_dimension_numbers<[1], [0], [0], [1], [0, 0, 1, 1], [], []>} : vector<16x32xf32>, vector<32x32xf32>, vector<16x32xf32> -> vector<16x32xf32>
    %c0_4 = arith.constant 0 : index
    %c0_5 = arith.constant 0 : index
    %4 = vector.load %arg5[%c0_4, %c0_5] : memref<32x8xf32, #tpu.memory_space<vmem>>, vector<32x8xf32>
    %cst_6 = arith.constant dense<0.000000e+00> : vector<16x8xf32>
    %5 = tpu.matmul %3, %4, %cst_6 {dimension_numbers = #tpu.dot_dimension_numbers<[1], [0], [0], [1], [0, 0, 1, 1], [], []>} : vector<16x32xf32>, vector<32x8xf32>, vector<16x8xf32> -> vector<16x8xf32>
    %c0_7 = arith.constant 0 : index
    %c0_8 = arith.constant 0 : index
    %c0_9 = arith.constant 0 : index
    %6 = vector.load %arg2[%c0_7, %c0_8, %c0_9] : memref<2x64x32xf32, #tpu.memory_space<vmem>>, vector<2x64x32xf32>
    %7 = vector.shape_cast %6 : vector<2x64x32xf32> to vector<128x32xf32>
    %c0_10 = arith.constant 0 : index
    %c0_11 = arith.constant 0 : index
    %8 = vector.load %arg6[%c0_10, %c0_11] : memref<32x4xf32, #tpu.memory_space<vmem>>, vector<32x4xf32>
    %cst_12 = arith.constant dense<0.000000e+00> : vector<128x4xf32>
    %9 = tpu.matmul %7, %8, %cst_12 {dimension_numbers = #tpu.dot_dimension_numbers<[1], [0], [0], [1], [0, 0, 1, 1], [], []>} : vector<128x32xf32>, vector<32x4xf32>, vector<128x4xf32> -> vector<128x4xf32>
    %10 = vector.shape_cast %9 : vector<128x4xf32> to vector<16x8x4xf32>
    %11 = vector.extract_strided_slice %3 {offsets = [0, 0], sizes = [8, 32], strides = [1, 1]} : vector<16x32xf32> to vector<8x32xf32>
    %12 = vector.extract_strided_slice %5 {offsets = [0, 0], sizes = [8, 4], strides = [1, 1]} : vector<16x8xf32> to vector<8x4xf32>
    %13 = vector.extract_strided_slice %5 {offsets = [0, 4], sizes = [8, 4], strides = [1, 1]} : vector<16x8xf32> to vector<8x4xf32>
    %14 = tpu.transpose %13, [1, 0] : vector<8x4xf32> -> vector<4x8xf32>
    %15 = vector.extract_strided_slice %10 {offsets = [0, 0, 0], sizes = [8, 8, 4], strides = [1, 1, 1]} : vector<16x8x4xf32> to vector<8x8x4xf32>
    %c0_13 = arith.constant 0 : index
    %c0_14 = arith.constant 0 : index
    %c0_15 = arith.constant 0 : index
    %16 = vector.load %arg3[%c0_13, %c0_14, %c0_15] : memref<2x8x8xf32, #tpu.memory_space<vmem>>, vector<1x8x8xf32>
    %17 = vector.shape_cast %16 : vector<1x8x8xf32> to vector<8x8xf32>
    %cst_16 = arith.constant 0.000000e+00 : f32
    %18 = vector.broadcast %cst_16 : f32 to vector<8x8xf32>
    %19 = arith.cmpf one, %17, %18 : vector<8x8xf32>
    %cst_17 = arith.constant 0.000000e+00 : f32
    %cst_18 = arith.constant -1.000000e+30 : f32
    %20 = vector.broadcast %cst_17 : f32 to vector<8x8xf32>
    %21 = vector.broadcast %cst_18 : f32 to vector<8x8xf32>
    %22 = arith.select %19, %20, %21 : vector<8x8xi1>, vector<8x8xf32>
    %23 = vector.extract_strided_slice %12 {offsets = [0, 0], sizes = [8, 1], strides = [1, 1]} : vector<8x4xf32> to vector<8x1xf32>
    %24 = vector.extract_strided_slice %14 {offsets = [0, 0], sizes = [1, 8], strides = [1, 1]} : vector<4x8xf32> to vector<1x8xf32>
    %25 = vector.broadcast %23 : vector<8x1xf32> to vector<8x8xf32>
    %26 = vector.broadcast %24 : vector<1x8xf32> to vector<8x8xf32>
    %27 = arith.addf %25, %26 : vector<8x8xf32>
    %28 = vector.extract_strided_slice %15 {offsets = [0, 0, 0], sizes = [8, 8, 1], strides = [1, 1, 1]} : vector<8x8x4xf32> to vector<8x8x1xf32>
    %cst_19 = arith.constant dense<0.000000e+00> : vector<8x8xf32>
    %29 = vector.multi_reduction <add>, %28, %cst_19 [2] : vector<8x8x1xf32> to vector<8x8xf32>
    %30 = arith.addf %27, %29 : vector<8x8xf32>
    %cst_20 = arith.constant 0.000000e+00 : f32
    %31 = vector.broadcast %cst_20 : f32 to vector<8x8xf32>
    %32 = arith.cmpf oge, %30, %31 : vector<8x8xf32>
    %cst_21 = arith.constant 2.000000e-01 : f32
    %33 = vector.broadcast %cst_21 : f32 to vector<8x8xf32>
    %34 = arith.mulf %33, %30 : vector<8x8xf32>
    %35 = arith.select %32, %30, %34 : vector<8x8xi1>, vector<8x8xf32>
    %36 = arith.addf %35, %22 : vector<8x8xf32>
    %cst_22 = arith.constant dense<0xFF800000> : vector<8xf32>
    %37 = vector.multi_reduction <maximumf>, %36, %cst_22 [1] : vector<8x8xf32> to vector<8xf32>
    %38 = vector.shape_cast %37 : vector<8xf32> to vector<8x1xf32>
    %39 = vector.broadcast %38 : vector<8x1xf32> to vector<8x8xf32>
    %40 = arith.subf %36, %39 : vector<8x8xf32>
    %41 = math.exp %40 : vector<8x8xf32>
    %cst_23 = arith.constant dense<0.000000e+00> : vector<8xf32>
    %42 = vector.multi_reduction <add>, %41, %cst_23 [1] : vector<8x8xf32> to vector<8xf32>
    %43 = vector.shape_cast %42 : vector<8xf32> to vector<8x1xf32>
    %44 = tpu.reciprocal %43 {approx = true} : vector<8x1xf32> -> vector<8x1xf32>
    %45 = vector.broadcast %44 : vector<8x1xf32> to vector<8x8xf32>
    %46 = arith.mulf %41, %45 : vector<8x8xf32>
    %47 = vector.extract_strided_slice %11 {offsets = [0, 0], sizes = [8, 8], strides = [1, 1]} : vector<8x32xf32> to vector<8x8xf32>
    %cst_24 = arith.constant dense<0.000000e+00> : vector<8x8xf32>
    %48 = tpu.matmul %46, %47, %cst_24 {dimension_numbers = #tpu.dot_dimension_numbers<[1], [0], [0], [1], [0, 0, 1, 1], [], []>} : vector<8x8xf32>, vector<8x8xf32>, vector<8x8xf32> -> vector<8x8xf32>
    %49 = vector.extract_strided_slice %12 {offsets = [0, 1], sizes = [8, 1], strides = [1, 1]} : vector<8x4xf32> to vector<8x1xf32>
    %50 = vector.extract_strided_slice %14 {offsets = [1, 0], sizes = [1, 8], strides = [1, 1]} : vector<4x8xf32> to vector<1x8xf32>
    %51 = vector.broadcast %49 : vector<8x1xf32> to vector<8x8xf32>
    %52 = vector.broadcast %50 : vector<1x8xf32> to vector<8x8xf32>
    %53 = arith.addf %51, %52 : vector<8x8xf32>
    %54 = vector.extract_strided_slice %15 {offsets = [0, 0, 1], sizes = [8, 8, 1], strides = [1, 1, 1]} : vector<8x8x4xf32> to vector<8x8x1xf32>
    %cst_25 = arith.constant dense<0.000000e+00> : vector<8x8xf32>
    %55 = vector.multi_reduction <add>, %54, %cst_25 [2] : vector<8x8x1xf32> to vector<8x8xf32>
    %56 = arith.addf %53, %55 : vector<8x8xf32>
    %cst_26 = arith.constant 0.000000e+00 : f32
    %57 = vector.broadcast %cst_26 : f32 to vector<8x8xf32>
    %58 = arith.cmpf oge, %56, %57 : vector<8x8xf32>
    %cst_27 = arith.constant 2.000000e-01 : f32
    %59 = vector.broadcast %cst_27 : f32 to vector<8x8xf32>
    %60 = arith.mulf %59, %56 : vector<8x8xf32>
    %61 = arith.select %58, %56, %60 : vector<8x8xi1>, vector<8x8xf32>
    %62 = arith.addf %61, %22 : vector<8x8xf32>
    %cst_28 = arith.constant dense<0xFF800000> : vector<8xf32>
    %63 = vector.multi_reduction <maximumf>, %62, %cst_28 [1] : vector<8x8xf32> to vector<8xf32>
    %64 = vector.shape_cast %63 : vector<8xf32> to vector<8x1xf32>
    %65 = vector.broadcast %64 : vector<8x1xf32> to vector<8x8xf32>
    %66 = arith.subf %62, %65 : vector<8x8xf32>
    %67 = math.exp %66 : vector<8x8xf32>
    %cst_29 = arith.constant dense<0.000000e+00> : vector<8xf32>
    %68 = vector.multi_reduction <add>, %67, %cst_29 [1] : vector<8x8xf32> to vector<8xf32>
    %69 = vector.shape_cast %68 : vector<8xf32> to vector<8x1xf32>
    %70 = tpu.reciprocal %69 {approx = true} : vector<8x1xf32> -> vector<8x1xf32>
    %71 = vector.broadcast %70 : vector<8x1xf32> to vector<8x8xf32>
    %72 = arith.mulf %67, %71 : vector<8x8xf32>
    %73 = vector.extract_strided_slice %11 {offsets = [0, 8], sizes = [8, 8], strides = [1, 1]} : vector<8x32xf32> to vector<8x8xf32>
    %cst_30 = arith.constant dense<0.000000e+00> : vector<8x8xf32>
    %74 = tpu.matmul %72, %73, %cst_30 {dimension_numbers = #tpu.dot_dimension_numbers<[1], [0], [0], [1], [0, 0, 1, 1], [], []>} : vector<8x8xf32>, vector<8x8xf32>, vector<8x8xf32> -> vector<8x8xf32>
    %75 = vector.extract_strided_slice %12 {offsets = [0, 2], sizes = [8, 1], strides = [1, 1]} : vector<8x4xf32> to vector<8x1xf32>
    %76 = vector.extract_strided_slice %14 {offsets = [2, 0], sizes = [1, 8], strides = [1, 1]} : vector<4x8xf32> to vector<1x8xf32>
    %77 = vector.broadcast %75 : vector<8x1xf32> to vector<8x8xf32>
    %78 = vector.broadcast %76 : vector<1x8xf32> to vector<8x8xf32>
    %79 = arith.addf %77, %78 : vector<8x8xf32>
    %80 = vector.extract_strided_slice %15 {offsets = [0, 0, 2], sizes = [8, 8, 1], strides = [1, 1, 1]} : vector<8x8x4xf32> to vector<8x8x1xf32>
    %cst_31 = arith.constant dense<0.000000e+00> : vector<8x8xf32>
    %81 = vector.multi_reduction <add>, %80, %cst_31 [2] : vector<8x8x1xf32> to vector<8x8xf32>
    %82 = arith.addf %79, %81 : vector<8x8xf32>
    %cst_32 = arith.constant 0.000000e+00 : f32
    %83 = vector.broadcast %cst_32 : f32 to vector<8x8xf32>
    %84 = arith.cmpf oge, %82, %83 : vector<8x8xf32>
    %cst_33 = arith.constant 2.000000e-01 : f32
    %85 = vector.broadcast %cst_33 : f32 to vector<8x8xf32>
    %86 = arith.mulf %85, %82 : vector<8x8xf32>
    %87 = arith.select %84, %82, %86 : vector<8x8xi1>, vector<8x8xf32>
    %88 = arith.addf %87, %22 : vector<8x8xf32>
    %cst_34 = arith.constant dense<0xFF800000> : vector<8xf32>
    %89 = vector.multi_reduction <maximumf>, %88, %cst_34 [1] : vector<8x8xf32> to vector<8xf32>
    %90 = vector.shape_cast %89 : vector<8xf32> to vector<8x1xf32>
    %91 = vector.broadcast %90 : vector<8x1xf32> to vector<8x8xf32>
    %92 = arith.subf %88, %91 : vector<8x8xf32>
    %93 = math.exp %92 : vector<8x8xf32>
    %cst_35 = arith.constant dense<0.000000e+00> : vector<8xf32>
    %94 = vector.multi_reduction <add>, %93, %cst_35 [1] : vector<8x8xf32> to vector<8xf32>
    %95 = vector.shape_cast %94 : vector<8xf32> to vector<8x1xf32>
    %96 = tpu.reciprocal %95 {approx = true} : vector<8x1xf32> -> vector<8x1xf32>
    %97 = vector.broadcast %96 : vector<8x1xf32> to vector<8x8xf32>
    %98 = arith.mulf %93, %97 : vector<8x8xf32>
    %99 = vector.extract_strided_slice %11 {offsets = [0, 16], sizes = [8, 8], strides = [1, 1]} : vector<8x32xf32> to vector<8x8xf32>
    %cst_36 = arith.constant dense<0.000000e+00> : vector<8x8xf32>
    %100 = tpu.matmul %98, %99, %cst_36 {dimension_numbers = #tpu.dot_dimension_numbers<[1], [0], [0], [1], [0, 0, 1, 1], [], []>} : vector<8x8xf32>, vector<8x8xf32>, vector<8x8xf32> -> vector<8x8xf32>
    %101 = vector.extract_strided_slice %12 {offsets = [0, 3], sizes = [8, 1], strides = [1, 1]} : vector<8x4xf32> to vector<8x1xf32>
    %102 = vector.extract_strided_slice %14 {offsets = [3, 0], sizes = [1, 8], strides = [1, 1]} : vector<4x8xf32> to vector<1x8xf32>
    %103 = vector.broadcast %101 : vector<8x1xf32> to vector<8x8xf32>
    %104 = vector.broadcast %102 : vector<1x8xf32> to vector<8x8xf32>
    %105 = arith.addf %103, %104 : vector<8x8xf32>
    %106 = vector.extract_strided_slice %15 {offsets = [0, 0, 3], sizes = [8, 8, 1], strides = [1, 1, 1]} : vector<8x8x4xf32> to vector<8x8x1xf32>
    %cst_37 = arith.constant dense<0.000000e+00> : vector<8x8xf32>
    %107 = vector.multi_reduction <add>, %106, %cst_37 [2] : vector<8x8x1xf32> to vector<8x8xf32>
    %108 = arith.addf %105, %107 : vector<8x8xf32>
    %cst_38 = arith.constant 0.000000e+00 : f32
    %109 = vector.broadcast %cst_38 : f32 to vector<8x8xf32>
    %110 = arith.cmpf oge, %108, %109 : vector<8x8xf32>
    %cst_39 = arith.constant 2.000000e-01 : f32
    %111 = vector.broadcast %cst_39 : f32 to vector<8x8xf32>
    %112 = arith.mulf %111, %108 : vector<8x8xf32>
    %113 = arith.select %110, %108, %112 : vector<8x8xi1>, vector<8x8xf32>
    %114 = arith.addf %113, %22 : vector<8x8xf32>
    %cst_40 = arith.constant dense<0xFF800000> : vector<8xf32>
    %115 = vector.multi_reduction <maximumf>, %114, %cst_40 [1] : vector<8x8xf32> to vector<8xf32>
    %116 = vector.shape_cast %115 : vector<8xf32> to vector<8x1xf32>
    %117 = vector.broadcast %116 : vector<8x1xf32> to vector<8x8xf32>
    %118 = arith.subf %114, %117 : vector<8x8xf32>
    %119 = math.exp %118 : vector<8x8xf32>
    %cst_41 = arith.constant dense<0.000000e+00> : vector<8xf32>
    %120 = vector.multi_reduction <add>, %119, %cst_41 [1] : vector<8x8xf32> to vector<8xf32>
    %121 = vector.shape_cast %120 : vector<8xf32> to vector<8x1xf32>
    %122 = tpu.reciprocal %121 {approx = true} : vector<8x1xf32> -> vector<8x1xf32>
    %123 = vector.broadcast %122 : vector<8x1xf32> to vector<8x8xf32>
    %124 = arith.mulf %119, %123 : vector<8x8xf32>
    %125 = vector.extract_strided_slice %11 {offsets = [0, 24], sizes = [8, 8], strides = [1, 1]} : vector<8x32xf32> to vector<8x8xf32>
    %cst_42 = arith.constant dense<0.000000e+00> : vector<8x8xf32>
    %126 = tpu.matmul %124, %125, %cst_42 {dimension_numbers = #tpu.dot_dimension_numbers<[1], [0], [0], [1], [0, 0, 1, 1], [], []>} : vector<8x8xf32>, vector<8x8xf32>, vector<8x8xf32> -> vector<8x8xf32>
    %127 = tpu.concatenate %48, %74, %100, %126 in 1 : vector<8x8xf32>, vector<8x8xf32>, vector<8x8xf32>, vector<8x8xf32> -> vector<8x32xf32>
    %c0_43 = arith.constant 0 : index
    %c0_44 = arith.constant 0 : index
    %c0_45 = arith.constant 0 : index
    %128 = vector.load %arg7[%c0_43, %c0_44, %c0_45] : memref<2x8x32xf32, #tpu.memory_space<vmem>>, vector<1x8x32xf32>
    %129 = vector.shape_cast %128 : vector<1x8x32xf32> to vector<8x32xf32>
    %130 = vector.shape_cast %127 : vector<8x32xf32> to vector<1x8x32xf32>
    tpu.vector_store %arg7[%c0_43, %c0_44, %c0_45], %130 {strides = array<i32>} : memref<2x8x32xf32, #tpu.memory_space<vmem>>, vector<1x8x32xf32>,
    %131 = vector.extract_strided_slice %3 {offsets = [8, 0], sizes = [8, 32], strides = [1, 1]} : vector<16x32xf32> to vector<8x32xf32>
    %132 = vector.extract_strided_slice %5 {offsets = [8, 0], sizes = [8, 4], strides = [1, 1]} : vector<16x8xf32> to vector<8x4xf32>
    %133 = vector.extract_strided_slice %5 {offsets = [8, 4], sizes = [8, 4], strides = [1, 1]} : vector<16x8xf32> to vector<8x4xf32>
    %134 = tpu.transpose %133, [1, 0] : vector<8x4xf32> -> vector<4x8xf32>
    %135 = vector.extract_strided_slice %10 {offsets = [8, 0, 0], sizes = [8, 8, 4], strides = [1, 1, 1]} : vector<16x8x4xf32> to vector<8x8x4xf32>
    %c1 = arith.constant 1 : index
    %c0_46 = arith.constant 0 : index
    %c0_47 = arith.constant 0 : index
    %136 = vector.load %arg3[%c1, %c0_46, %c0_47] : memref<2x8x8xf32, #tpu.memory_space<vmem>>, vector<1x8x8xf32>
    %137 = vector.shape_cast %136 : vector<1x8x8xf32> to vector<8x8xf32>
    %cst_48 = arith.constant 0.000000e+00 : f32
    %138 = vector.broadcast %cst_48 : f32 to vector<8x8xf32>
    %139 = arith.cmpf one, %137, %138 : vector<8x8xf32>
    %cst_49 = arith.constant 0.000000e+00 : f32
    %cst_50 = arith.constant -1.000000e+30 : f32
    %140 = vector.broadcast %cst_49 : f32 to vector<8x8xf32>
    %141 = vector.broadcast %cst_50 : f32 to vector<8x8xf32>
    %142 = arith.select %139, %140, %141 : vector<8x8xi1>, vector<8x8xf32>
    %143 = vector.extract_strided_slice %132 {offsets = [0, 0], sizes = [8, 1], strides = [1, 1]} : vector<8x4xf32> to vector<8x1xf32>
    %144 = vector.extract_strided_slice %134 {offsets = [0, 0], sizes = [1, 8], strides = [1, 1]} : vector<4x8xf32> to vector<1x8xf32>
    %145 = vector.broadcast %143 : vector<8x1xf32> to vector<8x8xf32>
    %146 = vector.broadcast %144 : vector<1x8xf32> to vector<8x8xf32>
    %147 = arith.addf %145, %146 : vector<8x8xf32>
    %148 = vector.extract_strided_slice %135 {offsets = [0, 0, 0], sizes = [8, 8, 1], strides = [1, 1, 1]} : vector<8x8x4xf32> to vector<8x8x1xf32>
    %cst_51 = arith.constant dense<0.000000e+00> : vector<8x8xf32>
    %149 = vector.multi_reduction <add>, %148, %cst_51 [2] : vector<8x8x1xf32> to vector<8x8xf32>
    %150 = arith.addf %147, %149 : vector<8x8xf32>
    %cst_52 = arith.constant 0.000000e+00 : f32
    %151 = vector.broadcast %cst_52 : f32 to vector<8x8xf32>
    %152 = arith.cmpf oge, %150, %151 : vector<8x8xf32>
    %cst_53 = arith.constant 2.000000e-01 : f32
    %153 = vector.broadcast %cst_53 : f32 to vector<8x8xf32>
    %154 = arith.mulf %153, %150 : vector<8x8xf32>
    %155 = arith.select %152, %150, %154 : vector<8x8xi1>, vector<8x8xf32>
    %156 = arith.addf %155, %142 : vector<8x8xf32>
    %cst_54 = arith.constant dense<0xFF800000> : vector<8xf32>
    %157 = vector.multi_reduction <maximumf>, %156, %cst_54 [1] : vector<8x8xf32> to vector<8xf32>
    %158 = vector.shape_cast %157 : vector<8xf32> to vector<8x1xf32>
    %159 = vector.broadcast %158 : vector<8x1xf32> to vector<8x8xf32>
    %160 = arith.subf %156, %159 : vector<8x8xf32>
    %161 = math.exp %160 : vector<8x8xf32>
    %cst_55 = arith.constant dense<0.000000e+00> : vector<8xf32>
    %162 = vector.multi_reduction <add>, %161, %cst_55 [1] : vector<8x8xf32> to vector<8xf32>
    %163 = vector.shape_cast %162 : vector<8xf32> to vector<8x1xf32>
    %164 = tpu.reciprocal %163 {approx = true} : vector<8x1xf32> -> vector<8x1xf32>
    %165 = vector.broadcast %164 : vector<8x1xf32> to vector<8x8xf32>
    %166 = arith.mulf %161, %165 : vector<8x8xf32>
    %167 = vector.extract_strided_slice %131 {offsets = [0, 0], sizes = [8, 8], strides = [1, 1]} : vector<8x32xf32> to vector<8x8xf32>
    %cst_56 = arith.constant dense<0.000000e+00> : vector<8x8xf32>
    %168 = tpu.matmul %166, %167, %cst_56 {dimension_numbers = #tpu.dot_dimension_numbers<[1], [0], [0], [1], [0, 0, 1, 1], [], []>} : vector<8x8xf32>, vector<8x8xf32>, vector<8x8xf32> -> vector<8x8xf32>
    %169 = vector.extract_strided_slice %132 {offsets = [0, 1], sizes = [8, 1], strides = [1, 1]} : vector<8x4xf32> to vector<8x1xf32>
    %170 = vector.extract_strided_slice %134 {offsets = [1, 0], sizes = [1, 8], strides = [1, 1]} : vector<4x8xf32> to vector<1x8xf32>
    %171 = vector.broadcast %169 : vector<8x1xf32> to vector<8x8xf32>
    %172 = vector.broadcast %170 : vector<1x8xf32> to vector<8x8xf32>
    %173 = arith.addf %171, %172 : vector<8x8xf32>
    %174 = vector.extract_strided_slice %135 {offsets = [0, 0, 1], sizes = [8, 8, 1], strides = [1, 1, 1]} : vector<8x8x4xf32> to vector<8x8x1xf32>
    %cst_57 = arith.constant dense<0.000000e+00> : vector<8x8xf32>
    %175 = vector.multi_reduction <add>, %174, %cst_57 [2] : vector<8x8x1xf32> to vector<8x8xf32>
    %176 = arith.addf %173, %175 : vector<8x8xf32>
    %cst_58 = arith.constant 0.000000e+00 : f32
    %177 = vector.broadcast %cst_58 : f32 to vector<8x8xf32>
    %178 = arith.cmpf oge, %176, %177 : vector<8x8xf32>
    %cst_59 = arith.constant 2.000000e-01 : f32
    %179 = vector.broadcast %cst_59 : f32 to vector<8x8xf32>
    %180 = arith.mulf %179, %176 : vector<8x8xf32>
    %181 = arith.select %178, %176, %180 : vector<8x8xi1>, vector<8x8xf32>
    %182 = arith.addf %181, %142 : vector<8x8xf32>
    %cst_60 = arith.constant dense<0xFF800000> : vector<8xf32>
    %183 = vector.multi_reduction <maximumf>, %182, %cst_60 [1] : vector<8x8xf32> to vector<8xf32>
    %184 = vector.shape_cast %183 : vector<8xf32> to vector<8x1xf32>
    %185 = vector.broadcast %184 : vector<8x1xf32> to vector<8x8xf32>
    %186 = arith.subf %182, %185 : vector<8x8xf32>
    %187 = math.exp %186 : vector<8x8xf32>
    %cst_61 = arith.constant dense<0.000000e+00> : vector<8xf32>
    %188 = vector.multi_reduction <add>, %187, %cst_61 [1] : vector<8x8xf32> to vector<8xf32>
    %189 = vector.shape_cast %188 : vector<8xf32> to vector<8x1xf32>
    %190 = tpu.reciprocal %189 {approx = true} : vector<8x1xf32> -> vector<8x1xf32>
    %191 = vector.broadcast %190 : vector<8x1xf32> to vector<8x8xf32>
    %192 = arith.mulf %187, %191 : vector<8x8xf32>
    %193 = vector.extract_strided_slice %131 {offsets = [0, 8], sizes = [8, 8], strides = [1, 1]} : vector<8x32xf32> to vector<8x8xf32>
    %cst_62 = arith.constant dense<0.000000e+00> : vector<8x8xf32>
    %194 = tpu.matmul %192, %193, %cst_62 {dimension_numbers = #tpu.dot_dimension_numbers<[1], [0], [0], [1], [0, 0, 1, 1], [], []>} : vector<8x8xf32>, vector<8x8xf32>, vector<8x8xf32> -> vector<8x8xf32>
    %195 = vector.extract_strided_slice %132 {offsets = [0, 2], sizes = [8, 1], strides = [1, 1]} : vector<8x4xf32> to vector<8x1xf32>
    %196 = vector.extract_strided_slice %134 {offsets = [2, 0], sizes = [1, 8], strides = [1, 1]} : vector<4x8xf32> to vector<1x8xf32>
    %197 = vector.broadcast %195 : vector<8x1xf32> to vector<8x8xf32>
    %198 = vector.broadcast %196 : vector<1x8xf32> to vector<8x8xf32>
    %199 = arith.addf %197, %198 : vector<8x8xf32>
    %200 = vector.extract_strided_slice %135 {offsets = [0, 0, 2], sizes = [8, 8, 1], strides = [1, 1, 1]} : vector<8x8x4xf32> to vector<8x8x1xf32>
    %cst_63 = arith.constant dense<0.000000e+00> : vector<8x8xf32>
    %201 = vector.multi_reduction <add>, %200, %cst_63 [2] : vector<8x8x1xf32> to vector<8x8xf32>
    %202 = arith.addf %199, %201 : vector<8x8xf32>
    %cst_64 = arith.constant 0.000000e+00 : f32
    %203 = vector.broadcast %cst_64 : f32 to vector<8x8xf32>
    %204 = arith.cmpf oge, %202, %203 : vector<8x8xf32>
    %cst_65 = arith.constant 2.000000e-01 : f32
    %205 = vector.broadcast %cst_65 : f32 to vector<8x8xf32>
    %206 = arith.mulf %205, %202 : vector<8x8xf32>
    %207 = arith.select %204, %202, %206 : vector<8x8xi1>, vector<8x8xf32>
    %208 = arith.addf %207, %142 : vector<8x8xf32>
    %cst_66 = arith.constant dense<0xFF800000> : vector<8xf32>
    %209 = vector.multi_reduction <maximumf>, %208, %cst_66 [1] : vector<8x8xf32> to vector<8xf32>
    %210 = vector.shape_cast %209 : vector<8xf32> to vector<8x1xf32>
    %211 = vector.broadcast %210 : vector<8x1xf32> to vector<8x8xf32>
    %212 = arith.subf %208, %211 : vector<8x8xf32>
    %213 = math.exp %212 : vector<8x8xf32>
    %cst_67 = arith.constant dense<0.000000e+00> : vector<8xf32>
    %214 = vector.multi_reduction <add>, %213, %cst_67 [1] : vector<8x8xf32> to vector<8xf32>
    %215 = vector.shape_cast %214 : vector<8xf32> to vector<8x1xf32>
    %216 = tpu.reciprocal %215 {approx = true} : vector<8x1xf32> -> vector<8x1xf32>
    %217 = vector.broadcast %216 : vector<8x1xf32> to vector<8x8xf32>
    %218 = arith.mulf %213, %217 : vector<8x8xf32>
    %219 = vector.extract_strided_slice %131 {offsets = [0, 16], sizes = [8, 8], strides = [1, 1]} : vector<8x32xf32> to vector<8x8xf32>
    %cst_68 = arith.constant dense<0.000000e+00> : vector<8x8xf32>
    %220 = tpu.matmul %218, %219, %cst_68 {dimension_numbers = #tpu.dot_dimension_numbers<[1], [0], [0], [1], [0, 0, 1, 1], [], []>} : vector<8x8xf32>, vector<8x8xf32>, vector<8x8xf32> -> vector<8x8xf32>
    %221 = vector.extract_strided_slice %132 {offsets = [0, 3], sizes = [8, 1], strides = [1, 1]} : vector<8x4xf32> to vector<8x1xf32>
    %222 = vector.extract_strided_slice %134 {offsets = [3, 0], sizes = [1, 8], strides = [1, 1]} : vector<4x8xf32> to vector<1x8xf32>
    %223 = vector.broadcast %221 : vector<8x1xf32> to vector<8x8xf32>
    %224 = vector.broadcast %222 : vector<1x8xf32> to vector<8x8xf32>
    %225 = arith.addf %223, %224 : vector<8x8xf32>
    %226 = vector.extract_strided_slice %135 {offsets = [0, 0, 3], sizes = [8, 8, 1], strides = [1, 1, 1]} : vector<8x8x4xf32> to vector<8x8x1xf32>
    %cst_69 = arith.constant dense<0.000000e+00> : vector<8x8xf32>
    %227 = vector.multi_reduction <add>, %226, %cst_69 [2] : vector<8x8x1xf32> to vector<8x8xf32>
    %228 = arith.addf %225, %227 : vector<8x8xf32>
    %cst_70 = arith.constant 0.000000e+00 : f32
    %229 = vector.broadcast %cst_70 : f32 to vector<8x8xf32>
    %230 = arith.cmpf oge, %228, %229 : vector<8x8xf32>
    %cst_71 = arith.constant 2.000000e-01 : f32
    %231 = vector.broadcast %cst_71 : f32 to vector<8x8xf32>
    %232 = arith.mulf %231, %228 : vector<8x8xf32>
    %233 = arith.select %230, %228, %232 : vector<8x8xi1>, vector<8x8xf32>
    %234 = arith.addf %233, %142 : vector<8x8xf32>
    %cst_72 = arith.constant dense<0xFF800000> : vector<8xf32>
    %235 = vector.multi_reduction <maximumf>, %234, %cst_72 [1] : vector<8x8xf32> to vector<8xf32>
    %236 = vector.shape_cast %235 : vector<8xf32> to vector<8x1xf32>
    %237 = vector.broadcast %236 : vector<8x1xf32> to vector<8x8xf32>
    %238 = arith.subf %234, %237 : vector<8x8xf32>
    %239 = math.exp %238 : vector<8x8xf32>
    %cst_73 = arith.constant dense<0.000000e+00> : vector<8xf32>
    %240 = vector.multi_reduction <add>, %239, %cst_73 [1] : vector<8x8xf32> to vector<8xf32>
    %241 = vector.shape_cast %240 : vector<8xf32> to vector<8x1xf32>
    %242 = tpu.reciprocal %241 {approx = true} : vector<8x1xf32> -> vector<8x1xf32>
    %243 = vector.broadcast %242 : vector<8x1xf32> to vector<8x8xf32>
    %244 = arith.mulf %239, %243 : vector<8x8xf32>
    %245 = vector.extract_strided_slice %131 {offsets = [0, 24], sizes = [8, 8], strides = [1, 1]} : vector<8x32xf32> to vector<8x8xf32>
    %cst_74 = arith.constant dense<0.000000e+00> : vector<8x8xf32>
    %246 = tpu.matmul %244, %245, %cst_74 {dimension_numbers = #tpu.dot_dimension_numbers<[1], [0], [0], [1], [0, 0, 1, 1], [], []>} : vector<8x8xf32>, vector<8x8xf32>, vector<8x8xf32> -> vector<8x8xf32>
    %247 = tpu.concatenate %168, %194, %220, %246 in 1 : vector<8x8xf32>, vector<8x8xf32>, vector<8x8xf32>, vector<8x8xf32> -> vector<8x32xf32>
    %c1_75 = arith.constant 1 : index
    %c0_76 = arith.constant 0 : index
    %c0_77 = arith.constant 0 : index
    %248 = vector.load %arg7[%c1_75, %c0_76, %c0_77] : memref<2x8x32xf32, #tpu.memory_space<vmem>>, vector<1x8x32xf32>
    %249 = vector.shape_cast %248 : vector<1x8x32xf32> to vector<8x32xf32>
    %250 = vector.shape_cast %247 : vector<8x32xf32> to vector<1x8x32xf32>
    tpu.vector_store %arg7[%c1_75, %c0_76, %c0_77], %250 {strides = array<i32>} : memref<2x8x32xf32, #tpu.memory_space<vmem>>, vector<1x8x32xf32>,
    return
  }
  func.func @transform_0(%arg0: i32) -> (i32, i32, i32) {
    %c0_i32 = arith.constant 0 : i32
    %c0_i32_0 = arith.constant 0 : i32
    %c0_i32_1 = arith.constant 0 : i32
    return %arg0, %c0_i32, %c0_i32_0 : i32, i32, i32
  }
  func.func @transform_1(%arg0: i32) -> (i32, i32, i32) {
    %c0_i32 = arith.constant 0 : i32
    %c0_i32_0 = arith.constant 0 : i32
    %c0_i32_1 = arith.constant 0 : i32
    return %arg0, %c0_i32, %c0_i32_0 : i32, i32, i32
  }
  func.func @transform_2(%arg0: i32) -> (i32, i32, i32) {
    %c0_i32 = arith.constant 0 : i32
    %c0_i32_0 = arith.constant 0 : i32
    %c0_i32_1 = arith.constant 0 : i32
    return %arg0, %c0_i32, %c0_i32_0 : i32, i32, i32
  }
  func.func @transform_3(%arg0: i32) -> (i32, i32) {
    %c0_i32 = arith.constant 0 : i32
    %c0_i32_0 = arith.constant 0 : i32
    %c0_i32_1 = arith.constant 0 : i32
    return %c0_i32, %c0_i32_0 : i32, i32
  }
  func.func @transform_4(%arg0: i32) -> (i32, i32) {
    %c0_i32 = arith.constant 0 : i32
    %c0_i32_0 = arith.constant 0 : i32
    %c0_i32_1 = arith.constant 0 : i32
    return %c0_i32, %c0_i32_0 : i32, i32
  }
  func.func @transform_5(%arg0: i32) -> (i32, i32) {
    %c0_i32 = arith.constant 0 : i32
    %c0_i32_0 = arith.constant 0 : i32
    %c0_i32_1 = arith.constant 0 : i32
    return %c0_i32, %c0_i32_0 : i32, i32
  }
  func.func @transform_6(%arg0: i32) -> (i32, i32, i32) {
    %c0_i32 = arith.constant 0 : i32
    %c0_i32_0 = arith.constant 0 : i32
    %c0_i32_1 = arith.constant 0 : i32
    return %arg0, %c0_i32, %c0_i32_0 : i32, i32, i32
  }
}

</mosaic_0001>

<llo_original>
// kernel: tpu_custom_call.1
$region0: #{tpu_custom_call.1}
  #allocation0 [shape = 'u32[]', space=smem, size = 0x4, offset = 0x4, fixed_abs, tag = 'smem constant byte address 0x4 - core index']
  #allocation1 [shape = 'u32[144,128]{1,0:T(1,128)}', space=vmem, size = 0x12000, scoped, tag = 'internal scratch']
  %s0 = inlined_call_operand.vmem [shape: f32[2,8,32], index: 0, kind: input, shape index: {}]
  %s1 = inlined_call_operand.vmem [shape: f32[2,64,32], index: 1, kind: input, shape index: {}]
  %s2 = inlined_call_operand.vmem [shape: f32[2,8,8], index: 2, kind: input, shape index: {}]
  %s3 = inlined_call_operand.vmem [shape: f32[32,32], index: 3, kind: input, shape index: {}]
  %s4 = inlined_call_operand.vmem [shape: f32[32,8], index: 4, kind: input, shape index: {}]
  %s5 = inlined_call_operand.vmem [shape: f32[32,4], index: 5, kind: input, shape index: {}]
  %s6 = inlined_call_operand.hbm [shape: f32[2,8,32], index: 6, kind: output, shape index: {}]
  %s7 = sld [smem:[#allocation0]]
  $region34: #{tpu_custom_call.1} parent=0
    _
  %s9 = ssub.s32 1, %s7
  %s10 = scalar_select 0, %s9, %s7
  $region1: #{tpu_custom_call.1} parent=0
    #allocation2 [shape = 'u8[8192]{0}', space=vmem, size = 0x2000, scoped, tag = 'output window, operand 0, single buffered']
    #allocation3 [shape = 's32[1]{0}', space=sflag, size = 0x4, scoped, tag = 'scoped memory for tpu_custom_call.1']
    %11 = vsyncpa [#allocation3], 0
    // Predicated region
    $region2: #{tpu_custom_call.1} parent=1 // pred_check
      _
    $region3: #{tpu_custom_call.1} parent=1 // pred_check_branch
      %13 = sbr.rel (0) target = $region5
    $region4: #{tpu_custom_call.1} parent=1 // pred_region
      _
    $region5: #{tpu_custom_call.1} parent=1 // pred_fallthru
      _
    // Predicated region
    $region6: #{tpu_custom_call.1} parent=1 // pred_check
      _
    $region7: #{tpu_custom_call.1} parent=1 // pred_check_branch
      %15 = sbr.rel (0) target = $region9
    $region8: #{tpu_custom_call.1} parent=1 // pred_region
      _
    $region9: #{tpu_custom_call.1} parent=1 // pred_fallthru
      _
    // Predicated region
    $region10: #{tpu_custom_call.1} parent=1 // pred_check
      _
    $region11: #{tpu_custom_call.1} parent=1 // pred_check_branch
      %17 = sbr.rel (0) target = $region13
    $region12: #{tpu_custom_call.1} parent=1 // pred_region
      _
    $region13: #{tpu_custom_call.1} parent=1 // pred_fallthru
      _
    // Predicated region
    $region14: #{tpu_custom_call.1} parent=1 // pred_check
      _
    $region15: #{tpu_custom_call.1} parent=1 // pred_check_branch
      %19 = sbr.rel (0) target = $region17
    $region16: #{tpu_custom_call.1} parent=1 // pred_region
      _
    $region17: #{tpu_custom_call.1} parent=1 // pred_fallthru
      _
    // Predicated region
    $region18: #{tpu_custom_call.1} parent=1 // pred_check
      _
    $region19: #{tpu_custom_call.1} parent=1 // pred_check_branch
      %21 = sbr.rel (0) target = $region21
    $region20: #{tpu_custom_call.1} parent=1 // pred_region
      _
    $region21: #{tpu_custom_call.1} parent=1 // pred_fallthru
      _
    // Predicated region
    $region22: #{tpu_custom_call.1} parent=1 // pred_check
      _
    $region23: #{tpu_custom_call.1} parent=1 // pred_check_branch
      %23 = sbr.rel (0) target = $region25
    $region24: #{tpu_custom_call.1} parent=1 // pred_region
      _
    $region25: #{tpu_custom_call.1} parent=1 // pred_fallthru
      _
    %v24 = vld [vmem:[%s0] sm:$0xff]
    %v25 = vld [vmem:[%s0 + $0x8] sm:$0xff]
    %v26 = vld [vmem:[%s3] sm:$0xff]
    %v27 = vld [vmem:[%s3 + $0x8] sm:$0xff]
    %v28 = vld [vmem:[%s3 + $0x10] sm:$0xff]
    %v29 = vld [vmem:[%s3 + $0x18] sm:$0xff]
    %vm30 = vcmask 261120
    %v32 = vsel %vm30, %v24, 0
    %v35 = vsel %vm30, %v25, 0
    %37 = vmatprep.subr.mxu0 0.0
    %38 = vmatpush1.msra.mxu0 %v26
    %39 = vmatprep.subr.mxu0 0.0
    %40 = vmatpush1.msra.mxu0 %v27
    %41 = vmatprep.subr.mxu0 0.0
    %42 = vmatpush1.msra.mxu0 %v28
    %43 = vmatprep.subr.mxu0 0.0
    %44 = vmatpush1.msra.mxu0 %v29
    %45 = vmatprep.subr.mxu0 0.0
    %46 = vmatpush1.msra.mxu0 0.0
    %47 = vmatprep.subr.mxu0 0.0
    %48 = vmatpush1.msra.mxu0 0.0
    %49 = vmatprep.subr.mxu0 0.0
    %50 = vmatpush1.msra.mxu0 0.0
    %51 = vmatprep.subr.mxu0 0.0
    %52 = vmatpush1.msra.mxu0 0.0
    %53 = vmatprep.subr.mxu0 0.0
    %54 = vmatpush1.msra.mxu0 0.0
    %55 = vmatprep.subr.mxu0 0.0
    %56 = vmatpush1.msra.mxu0 0.0
    %57 = vmatprep.subr.mxu0 0.0
    %58 = vmatpush1.msra.mxu0 0.0
    %59 = vmatprep.subr.mxu0 0.0
    %60 = vmatpush1.msra.mxu0 0.0
    %61 = vmatprep.subr.mxu0 0.0
    %62 = vmatpush1.msra.mxu0 0.0
    %63 = vmatprep.subr.mxu0 0.0
    %64 = vmatpush1.msra.mxu0 0.0
    %65 = vmatprep.subr.mxu0 0.0
    %66 = vmatpush1.msra.mxu0 0.0
    %67 = vmatprep.subr.mxu0 0.0
    %68 = vmatpush1.msra.mxu0 0.0
    %69 = vmatprep.subr.mxu0 0.0
    %70 = vmatpush1.msra.mxu0 0.0
    %71 = vmatprep.subr.mxu0 0.0
    %72 = vmatpush1.msra.mxu0 0.0
    %73 = vmatprep.subr.mxu0 0.0
    %74 = vmatpush1.msra.mxu0 0.0
    %75 = vmatprep.subr.mxu0 0.0
    %76 = vmatpush1.msra.mxu0 0.0
    %77 = vmatprep.subr.mxu0 0.0
    %78 = vmatpush1.msra.mxu0 0.0
    %79 = vmatprep.subr.mxu0 0.0
    %80 = vmatpush1.msra.mxu0 0.0
    %81 = vmatprep.subr.mxu0 0.0
    %82 = vmatpush1.msra.mxu0 0.0
    %83 = vmatprep.subr.mxu0 0.0
    %84 = vmatpush1.msra.mxu0 0.0
    %85 = vmatprep.subr.mxu0 0.0
    %86 = vmatpush1.msra.mxu0 0.0
    %87 = vmatprep.subr.mxu0 0.0
    %88 = vmatpush1.msra.mxu0 0.0
    %89 = vmatprep.subr.mxu0 0.0
    %90 = vmatpush1.msra.mxu0 0.0
    %91 = vmatprep.subr.mxu0 0.0
    %92 = vmatpush1.msra.mxu0 0.0
    %93 = vmatprep.subr.mxu0 0.0
    %94 = vmatpush1.msra.mxu0 0.0
    %95 = vmatprep.subr.mxu0 0.0
    %96 = vmatpush1.msra.mxu0 0.0
    %97 = vmatprep.subr.mxu0 0.0
    %98 = vmatpush1.msra.mxu0 0.0
    %99 = vmatprep.subr.mxu0 0.0
    %100 = vmatpush1.msra.mxu0 0.0
    %101 = vmatprep.mubr.f32.mxu0 0.0
    %102 = vmatmul.mubr.f32.gmra.mrb[0].mxu0 %v32
    %v103 = vpop.f32.mrb[0].mxu0
    %v104 = vadd.f32 0.0, %v103
    %v105 = vpop.f32.mrb[0].mxu0
    %106 = vmatprep.mubr.f32.mxu0 0.0
    %107 = vmatmul.mubr.f32.gmra.mrb[0].mxu0 %v35
    %v108 = vpop.f32.mrb[0].mxu0
    %v109 = vadd.f32 0.0, %v108
    %v110 = vpop.f32.mrb[0].mxu0
    %111 = vdwg.mxu0
    %v112 = vld [vmem:[%s4] sm:$0xff]
    %v113 = vld [vmem:[%s4 + $0x8] sm:$0xff]
    %v114 = vld [vmem:[%s4 + $0x10] sm:$0xff]
    %v115 = vld [vmem:[%s4 + $0x18] sm:$0xff]
    %v117 = vsel %vm30, %v104, 0
    %v120 = vsel %vm30, %v109, 0
    %122 = vmatprep.subr.mxu0 0.0
    %123 = vmatpush1.msra.mxu0 %v112
    %124 = vmatprep.subr.mxu0 0.0
    %125 = vmatpush1.msra.mxu0 %v113
    %126 = vmatprep.subr.mxu0 0.0
    %127 = vmatpush1.msra.mxu0 %v114
    %128 = vmatprep.subr.mxu0 0.0
    %129 = vmatpush1.msra.mxu0 %v115
    %130 = vmatprep.subr.mxu0 0.0
    %131 = vmatpush1.msra.mxu0 0.0
    %132 = vmatprep.subr.mxu0 0.0
    %133 = vmatpush1.msra.mxu0 0.0
    %134 = vmatprep.subr.mxu0 0.0
    %135 = vmatpush1.msra.mxu0 0.0
    %136 = vmatprep.subr.mxu0 0.0
    %137 = vmatpush1.msra.mxu0 0.0
    %138 = vmatprep.subr.mxu0 0.0
    %139 = vmatpush1.msra.mxu0 0.0
    %140 = vmatprep.subr.mxu0 0.0
    %141 = vmatpush1.msra.mxu0 0.0
    %142 = vmatprep.subr.mxu0 0.0
    %143 = vmatpush1.msra.mxu0 0.0
    %144 = vmatprep.subr.mxu0 0.0
    %145 = vmatpush1.msra.mxu0 0.0
    %146 = vmatprep.subr.mxu0 0.0
    %147 = vmatpush1.msra.mxu0 0.0
    %148 = vmatprep.subr.mxu0 0.0
    %149 = vmatpush1.msra.mxu0 0.0
    %150 = vmatprep.subr.mxu0 0.0
    %151 = vmatpush1.msra.mxu0 0.0
    %152 = vmatprep.subr.mxu0 0.0
    %153 = vmatpush1.msra.mxu0 0.0
    %154 = vmatprep.subr.mxu0 0.0
    %155 = vmatpush1.msra.mxu0 0.0
    %156 = vmatprep.subr.mxu0 0.0
    %157 = vmatpush1.msra.mxu0 0.0
    %158 = vmatprep.subr.mxu0 0.0
    %159 = vmatpush1.msra.mxu0 0.0
    %160 = vmatprep.subr.mxu0 0.0
    %161 = vmatpush1.msra.mxu0 0.0
    %162 = vmatprep.subr.mxu0 0.0
    %163 = vmatpush1.msra.mxu0 0.0
    %164 = vmatprep.subr.mxu0 0.0
    %165 = vmatpush1.msra.mxu0 0.0
    %166 = vmatprep.subr.mxu0 0.0
    %167 = vmatpush1.msra.mxu0 0.0
    %168 = vmatprep.subr.mxu0 0.0
    %169 = vmatpush1.msra.mxu0 0.0
    %170 = vmatprep.subr.mxu0 0.0
    %171 = vmatpush1.msra.mxu0 0.0
    %172 = vmatprep.subr.mxu0 0.0
    %173 = vmatpush1.msra.mxu0 0.0
    %174 = vmatprep.subr.mxu0 0.0
    %175 = vmatpush1.msra.mxu0 0.0
    %176 = vmatprep.subr.mxu0 0.0
    %177 = vmatpush1.msra.mxu0 0.0
    %178 = vmatprep.subr.mxu0 0.0
    %179 = vmatpush1.msra.mxu0 0.0
    %180 = vmatprep.subr.mxu0 0.0
    %181 = vmatpush1.msra.mxu0 0.0
    %182 = vmatprep.subr.mxu0 0.0
    %183 = vmatpush1.msra.mxu0 0.0
    %184 = vmatprep.subr.mxu0 0.0
    %185 = vmatpush1.msra.mxu0 0.0
    %186 = vmatprep.mubr.f32.mxu0 0.0
    %187 = vmatmul.mubr.f32.gmra.mrb[0].mxu0 %v117
    %v188 = vpop.f32.mrb[0].mxu0
    %v189 = vadd.f32 0.0, %v188
    %v190 = vpop.f32.mrb[0].mxu0
    %191 = vmatprep.mubr.f32.mxu0 0.0
    %192 = vmatmul.mubr.f32.gmra.mrb[0].mxu0 %v120
    %v193 = vpop.f32.mrb[0].mxu0
    %v194 = vadd.f32 0.0, %v193
    %v195 = vpop.f32.mrb[0].mxu0
    %196 = vdwg.mxu0
    %v197 = vld [vmem:[%s1] sm:$0xff]
    %v198 = vld [vmem:[%s1 + $0x8] sm:$0xff]
    %v199 = vld [vmem:[%s1 + $0x10] sm:$0xff]
    %v200 = vld [vmem:[%s1 + $0x18] sm:$0xff]
    %v201 = vld [vmem:[%s1 + $0x20] sm:$0xff]
    %v202 = vld [vmem:[%s1 + $0x28] sm:$0xff]
    %v203 = vld [vmem:[%s1 + $0x30] sm:$0xff]
    %v204 = vld [vmem:[%s1 + $0x38] sm:$0xff]
    %v205 = vld [vmem:[%s1 + $0x40] sm:$0xff]
    %v206 = vld [vmem:[%s1 + $0x48] sm:$0xff]
    %v207 = vld [vmem:[%s1 + $0x50] sm:$0xff]
    %v208 = vld [vmem:[%s1 + $0x58] sm:$0xff]
    %v209 = vld [vmem:[%s1 + $0x60] sm:$0xff]
    %v210 = vld [vmem:[%s1 + $0x68] sm:$0xff]
    %v211 = vld [vmem:[%s1 + $0x70] sm:$0xff]
    %v212 = vld [vmem:[%s1 + $0x78] sm:$0xff]
    %v213 = vld [vmem:[%s5] sm:$0xff]
    %v214 = vld [vmem:[%s5 + $0x8] sm:$0xff]
    %v215 = vld [vmem:[%s5 + $0x10] sm:$0xff]
    %v216 = vld [vmem:[%s5 + $0x18] sm:$0xff]
    %v218 = vsel %vm30, %v197, 0
    %v221 = vsel %vm30, %v198, 0
    %v224 = vsel %vm30, %v199, 0
    %v227 = vsel %vm30, %v200, 0
    %v230 = vsel %vm30, %v201, 0
    %v233 = vsel %vm30, %v202, 0
    %v236 = vsel %vm30, %v203, 0
    %v239 = vsel %vm30, %v204, 0
    %v242 = vsel %vm30, %v205, 0
    %v245 = vsel %vm30, %v206, 0
    %v248 = vsel %vm30, %v207, 0
    %v251 = vsel %vm30, %v208, 0
    %v254 = vsel %vm30, %v209, 0
    %v257 = vsel %vm30, %v210, 0
    %v260 = vsel %vm30, %v211, 0
    %v263 = vsel %vm30, %v212, 0
    %265 = vmatprep.subr.mxu0 0.0
    %266 = vmatpush1.msra.mxu0 %v213
    %267 = vmatprep.subr.mxu0 0.0
    %268 = vmatpush1.msra.mxu0 %v214
    %269 = vmatprep.subr.mxu0 0.0
    %270 = vmatpush1.msra.mxu0 %v215
    %271 = vmatprep.subr.mxu0 0.0
    %272 = vmatpush1.msra.mxu0 %v216
    %273 = vmatprep.subr.mxu0 0.0
    %274 = vmatpush1.msra.mxu0 0.0
    %275 = vmatprep.subr.mxu0 0.0
    %276 = vmatpush1.msra.mxu0 0.0
    %277 = vmatprep.subr.mxu0 0.0
    %278 = vmatpush1.msra.mxu0 0.0
    %279 = vmatprep.subr.mxu0 0.0
    %280 = vmatpush1.msra.mxu0 0.0
    %281 = vmatprep.subr.mxu0 0.0
    %282 = vmatpush1.msra.mxu0 0.0
    %283 = vmatprep.subr.mxu0 0.0
    %284 = vmatpush1.msra.mxu0 0.0
    %285 = vmatprep.subr.mxu0 0.0
    %286 = vmatpush1.msra.mxu0 0.0
    %287 = vmatprep.subr.mxu0 0.0
    %288 = vmatpush1.msra.mxu0 0.0
    %289 = vmatprep.subr.mxu0 0.0
    %290 = vmatpush1.msra.mxu0 0.0
    %291 = vmatprep.subr.mxu0 0.0
    %292 = vmatpush1.msra.mxu0 0.0
    %293 = vmatprep.subr.mxu0 0.0
    %294 = vmatpush1.msra.mxu0 0.0
    %295 = vmatprep.subr.mxu0 0.0
    %296 = vmatpush1.msra.mxu0 0.0
    %297 = vmatprep.subr.mxu0 0.0
    %298 = vmatpush1.msra.mxu0 0.0
    %299 = vmatprep.subr.mxu0 0.0
    %300 = vmatpush1.msra.mxu0 0.0
    %301 = vmatprep.subr.mxu0 0.0
    %302 = vmatpush1.msra.mxu0 0.0
    %303 = vmatprep.subr.mxu0 0.0
    %304 = vmatpush1.msra.mxu0 0.0
    %305 = vmatprep.subr.mxu0 0.0
    %306 = vmatpush1.msra.mxu0 0.0
    %307 = vmatprep.subr.mxu0 0.0
    %308 = vmatpush1.msra.mxu0 0.0
    %309 = vmatprep.subr.mxu0 0.0
    %310 = vmatpush1.msra.mxu0 0.0
    %311 = vmatprep.subr.mxu0 0.0
    %312 = vmatpush1.msra.mxu0 0.0
    %313 = vmatprep.subr.mxu0 0.0
    %314 = vmatpush1.msra.mxu0 0.0
    %315 = vmatprep.subr.mxu0 0.0
    %316 = vmatpush1.msra.mxu0 0.0
    %317 = vmatprep.subr.mxu0 0.0
    %318 = vmatpush1.msra.mxu0 0.0
    %319 = vmatprep.subr.mxu0 0.0
    %320 = vmatpush1.msra.mxu0 0.0
    %321 = vmatprep.subr.mxu0 0.0
    %322 = vmatpush1.msra.mxu0 0.0
    %323 = vmatprep.subr.mxu0 0.0
    %324 = vmatpush1.msra.mxu0 0.0
    %325 = vmatprep.subr.mxu0 0.0
    %326 = vmatpush1.msra.mxu0 0.0
    %327 = vmatprep.subr.mxu0 0.0
    %328 = vmatpush1.msra.mxu0 0.0
    %329 = vmatprep.mubr.f32.mxu0 0.0
    %330 = vmatmul.mubr.f32.gmra.mrb[0].mxu0 %v218
    %v331 = vpop.f32.mrb[0].mxu0
    %v332 = vadd.f32 0.0, %v331
    %v333 = vpop.f32.mrb[0].mxu0
    %334 = vmatprep.mubr.f32.mxu0 0.0
    %335 = vmatmul.mubr.f32.gmra.mrb[0].mxu0 %v221
    %v336 = vpop.f32.mrb[0].mxu0
    %v337 = vadd.f32 0.0, %v336
    %v338 = vpop.f32.mrb[0].mxu0
    %339 = vmatprep.mubr.f32.mxu0 0.0
    %340 = vmatmul.mubr.f32.gmra.mrb[0].mxu0 %v224
    %v341 = vpop.f32.mrb[0].mxu0
    %v342 = vadd.f32 0.0, %v341
    %v343 = vpop.f32.mrb[0].mxu0
    %344 = vmatprep.mubr.f32.mxu0 0.0
    %345 = vmatmul.mubr.f32.gmra.mrb[0].mxu0 %v227
    %v346 = vpop.f32.mrb[0].mxu0
    %v347 = vadd.f32 0.0, %v346
    %v348 = vpop.f32.mrb[0].mxu0
    %349 = vmatprep.mubr.f32.mxu0 0.0
    %350 = vmatmul.mubr.f32.gmra.mrb[0].mxu0 %v230
    %v351 = vpop.f32.mrb[0].mxu0
    %v352 = vadd.f32 0.0, %v351
    %v353 = vpop.f32.mrb[0].mxu0
    %354 = vmatprep.mubr.f32.mxu0 0.0
    %355 = vmatmul.mubr.f32.gmra.mrb[0].mxu0 %v233
    %v356 = vpop.f32.mrb[0].mxu0
    %v357 = vadd.f32 0.0, %v356
    %v358 = vpop.f32.mrb[0].mxu0
    %359 = vmatprep.mubr.f32.mxu0 0.0
    %360 = vmatmul.mubr.f32.gmra.mrb[0].mxu0 %v236
    %v361 = vpop.f32.mrb[0].mxu0
    %v362 = vadd.f32 0.0, %v361
    %v363 = vpop.f32.mrb[0].mxu0
    %364 = vmatprep.mubr.f32.mxu0 0.0
    %365 = vmatmul.mubr.f32.gmra.mrb[0].mxu0 %v239
    %v366 = vpop.f32.mrb[0].mxu0
    %v367 = vadd.f32 0.0, %v366
    %v368 = vpop.f32.mrb[0].mxu0
    %369 = vmatprep.mubr.f32.mxu0 0.0
    %370 = vmatmul.mubr.f32.gmra.mrb[0].mxu0 %v242
    %v371 = vpop.f32.mrb[0].mxu0
    %v372 = vadd.f32 0.0, %v371
    %v373 = vpop.f32.mrb[0].mxu0
    %374 = vmatprep.mubr.f32.mxu0 0.0
    %375 = vmatmul.mubr.f32.gmra.mrb[0].mxu0 %v245
    %v376 = vpop.f32.mrb[0].mxu0
    %v377 = vadd.f32 0.0, %v376
    %v378 = vpop.f32.mrb[0].mxu0
    %379 = vmatprep.mubr.f32.mxu0 0.0
    %380 = vmatmul.mubr.f32.gmra.mrb[0].mxu0 %v248
    %v381 = vpop.f32.mrb[0].mxu0
    %v382 = vadd.f32 0.0, %v381
    %v383 = vpop.f32.mrb[0].mxu0
    %384 = vmatprep.mubr.f32.mxu0 0.0
    %385 = vmatmul.mubr.f32.gmra.mrb[0].mxu0 %v251
    %v386 = vpop.f32.mrb[0].mxu0
    %v387 = vadd.f32 0.0, %v386
    %v388 = vpop.f32.mrb[0].mxu0
    %389 = vmatprep.mubr.f32.mxu0 0.0
    %390 = vmatmul.mubr.f32.gmra.mrb[0].mxu0 %v254
    %v391 = vpop.f32.mrb[0].mxu0
    %v392 = vadd.f32 0.0, %v391
    %v393 = vpop.f32.mrb[0].mxu0
    %394 = vmatprep.mubr.f32.mxu0 0.0
    %395 = vmatmul.mubr.f32.gmra.mrb[0].mxu0 %v257
    %v396 = vpop.f32.mrb[0].mxu0
    %v397 = vadd.f32 0.0, %v396
    %v398 = vpop.f32.mrb[0].mxu0
    %399 = vmatprep.mubr.f32.mxu0 0.0
    %400 = vmatmul.mubr.f32.gmra.mrb[0].mxu0 %v260
    %v401 = vpop.f32.mrb[0].mxu0
    %v402 = vadd.f32 0.0, %v401
    %v403 = vpop.f32.mrb[0].mxu0
    %404 = vmatprep.mubr.f32.mxu0 0.0
    %405 = vmatmul.mubr.f32.gmra.mrb[0].mxu0 %v263
    %v406 = vpop.f32.mrb[0].mxu0
    %v407 = vadd.f32 0.0, %v406
    %v408 = vpop.f32.mrb[0].mxu0
    %409 = vdwg.mxu0
    %411 = vrot.lane.b32.xlu0 %v189, 124
    %v412 = vpop.permute.xlu0 %411
    %414 = vxpose.xlu0.b32.start [1/16] %v412, 128
    %415 = vxpose.xlu0.b32.cont [2/16] 0.0, 128
    %416 = vxpose.xlu0.b32.cont [3/16] 0.0, 128
    %417 = vxpose.xlu0.b32.cont [4/16] 0.0, 128
    %418 = vxpose.xlu0.b32.cont [5/16] 0.0, 128
    %419 = vxpose.xlu0.b32.cont [6/16] 0.0, 128
    %420 = vxpose.xlu0.b32.cont [7/16] 0.0, 128
    %421 = vxpose.xlu0.b32.cont [8/16] 0.0, 128
    %422 = vxpose.xlu0.b32.cont [9/16] 0.0, 128
    %423 = vxpose.xlu0.b32.cont [10/16] 0.0, 128
    %424 = vxpose.xlu0.b32.cont [11/16] 0.0, 128
    %425 = vxpose.xlu0.b32.cont [12/16] 0.0, 128
    %426 = vxpose.xlu0.b32.cont [13/16] 0.0, 128
    %427 = vxpose.xlu0.b32.cont [14/16] 0.0, 128
    %428 = vxpose.xlu0.b32.cont [15/16] 0.0, 128
    %429 = vxpose.xlu0.b32.end [16/16] 0.0, 128
    %v430 = vpop.trf.xlu0
    %v431 = vpop.trf.xlu0
    %v432 = vpop.trf.xlu0
    %v433 = vpop.trf.xlu0
    %v434 = vpop.trf.xlu0
    %v435 = vpop.trf.xlu0
    %v436 = vpop.trf.xlu0
    %v437 = vpop.trf.xlu0
    %v438 = vpop.trf.xlu0
    %v439 = vpop.trf.xlu0
    %v440 = vpop.trf.xlu0
    %v441 = vpop.trf.xlu0
    %v442 = vpop.trf.xlu0
    %v443 = vpop.trf.xlu0
    %v444 = vpop.trf.xlu0
    %v445 = vpop.trf.xlu0
    %v446 = vld [vmem:[%s2] sm:$0xff]
    %vm447 = vcmp.ne.f32.partialorder %v446, 0.0
    %v448 = vsel %vm447, 0.0, -1e+30
    %449 = vset.pattern.permute.xlu0 0
    %450 = vperm.xlu0 %449, %v189
    %v451 = vpop.permute.xlu0 %450
    %v453 = vlaneseq
    %v454 = vshrl.u32 %v453, 7
    %v455 = vsub.s32 0, %v454
    %v456 = vrot.slane %v430, %v455
    %v457 = vadd.f32 %v451, %v456
    %v458 = vadd.f32 %v332, 0.0
    %v459 = vadd.f32 %v337, 0.0
    %v460 = vadd.f32 %v342, 0.0
    %v461 = vadd.f32 %v347, 0.0
    %v462 = vadd.f32 %v352, 0.0
    %v463 = vadd.f32 %v357, 0.0
    %v464 = vadd.f32 %v362, 0.0
    %v465 = vadd.f32 %v367, 0.0
    %474 = vset.pattern.permute.xlu0 0
    %475 = vperm.xlu0 %474, %v458
    %v476 = vpop.permute.xlu0 %475
    %477 = vset.pattern.permute.xlu0 0
    %478 = vperm.xlu0 %477, %v459
    %v479 = vpop.permute.xlu0 %478
    %480 = vset.pattern.permute.xlu0 0
    %481 = vperm.xlu0 %480, %v460
    %v482 = vpop.permute.xlu0 %481
    %483 = vset.pattern.permute.xlu0 0
    %484 = vperm.xlu0 %483, %v461
    %v485 = vpop.permute.xlu0 %484
    %486 = vset.pattern.permute.xlu0 0
    %487 = vperm.xlu0 %486, %v462
    %v488 = vpop.permute.xlu0 %487
    %489 = vset.pattern.permute.xlu0 0
    %490 = vperm.xlu0 %489, %v463
    %v491 = vpop.permute.xlu0 %490
    %492 = vset.pattern.permute.xlu0 0
    %493 = vperm.xlu0 %492, %v464
    %v494 = vpop.permute.xlu0 %493
    %495 = vset.pattern.permute.xlu0 0
    %496 = vperm.xlu0 %495, %v465
    %v497 = vpop.permute.xlu0 %496
    %v498 = vlaneseq
    %v499 = vand.u32 %v498, 127
    %v500 = vlaneseq
    %v501 = vshrl.u32 %v500, 7
    %v502 = vsub.s32 %v499, %v501
    %v503 = vrot.slane %v476, %v502
    %v504 = vlaneseq
    %v505 = vshrl.u32 %v504, 7
    %v506 = vsub.s32 %v499, %v505
    %v507 = vrot.slane %v479, %v506
    %v508 = vlaneseq
    %v509 = vshrl.u32 %v508, 7
    %v510 = vsub.s32 %v499, %v509
    %v511 = vrot.slane %v482, %v510
    %v512 = vlaneseq
    %v513 = vshrl.u32 %v512, 7
    %v514 = vsub.s32 %v499, %v513
    %v515 = vrot.slane %v485, %v514
    %v516 = vlaneseq
    %v517 = vshrl.u32 %v516, 7
    %v518 = vsub.s32 %v499, %v517
    %v519 = vrot.slane %v488, %v518
    %v520 = vlaneseq
    %v521 = vshrl.u32 %v520, 7
    %v522 = vsub.s32 %v499, %v521
    %v523 = vrot.slane %v491, %v522
    %v524 = vlaneseq
    %v525 = vshrl.u32 %v524, 7
    %v526 = vsub.s32 %v499, %v525
    %v527 = vrot.slane %v494, %v526
    %v528 = vlaneseq
    %v529 = vshrl.u32 %v528, 7
    %v530 = vsub.s32 %v499, %v529
    %v531 = vrot.slane %v497, %v530
    %vm532 = vcmask 1041409
    %v533 = vsel %vm532, %v507, %v503
    %vm534 = vcmask 1042434
    %v535 = vsel %vm534, %v511, %v533
    %vm536 = vcmask 1043459
    %v537 = vsel %vm536, %v515, %v535
    %vm538 = vcmask 1044484
    %v539 = vsel %vm538, %v519, %v537
    %vm540 = vcmask 1045509
    %v541 = vsel %vm540, %v523, %v539
    %vm542 = vcmask 1046534
    %v543 = vsel %vm542, %v527, %v541
    %vm544 = vcmask 1047559
    %v545 = vsel %vm544, %v531, %v543
    %v547 = vadd.f32 %v457, %v545
    %vm548 = vcmp.ge.f32.partialorder %v547, 0.0
    %v549 = vmul.f32 %v547, 0.2
    %v550 = vsel %vm548, %v547, %v549
    %v551 = vadd.f32 %v550, %v448
    %vm552 = vcmask 64512
    %v553 = vsel %vm552, %v551, -inf
    %554 = vmax.xlane.f32.xlu0 %v553
    %v555 = vpop.xlane.xlu0 %554
    %v556 = vsub.f32 %v551, %v555
    %v557 = vmul.f32 %v556, 1.442695
    %v558 = vpow.pop %v557
    %v559 = vsel %vm552, %v558, 0.0
    %560 = vadd.xlane.f32.xlu0 %v559
    %v561 = vpop.xlane.xlu0 %560
    %v562 = vrcp.pop %v561
    %v563 = vmul.f32 %v558, %v562
    %v565 = vsel %vm552, %v563, 0
    %567 = vmatprep.subr.mxu0 0.0
    %568 = vmatpush1.msra.mxu0 %v104
    %569 = vmatprep.subr.mxu0 0.0
    %570 = vmatpush1.msra.mxu0 0.0
    %571 = vmatprep.subr.mxu0 0.0
    %572 = vmatpush1.msra.mxu0 0.0
    %573 = vmatprep.subr.mxu0 0.0
    %574 = vmatpush1.msra.mxu0 0.0
    %575 = vmatprep.subr.mxu0 0.0
    %576 = vmatpush1.msra.mxu0 0.0
    %577 = vmatprep.subr.mxu0 0.0
    %578 = vmatpush1.msra.mxu0 0.0
    %579 = vmatprep.subr.mxu0 0.0
    %580 = vmatpush1.msra.mxu0 0.0
    %581 = vmatprep.subr.mxu0 0.0
    %582 = vmatpush1.msra.mxu0 0.0
    %583 = vmatprep.subr.mxu0 0.0
    %584 = vmatpush1.msra.mxu0 0.0
    %585 = vmatprep.subr.mxu0 0.0
    %586 = vmatpush1.msra.mxu0 0.0
    %587 = vmatprep.subr.mxu0 0.0
    %588 = vmatpush1.msra.mxu0 0.0
    %589 = vmatprep.subr.mxu0 0.0
    %590 = vmatpush1.msra.mxu0 0.0
    %591 = vmatprep.subr.mxu0 0.0
    %592 = vmatpush1.msra.mxu0 0.0
    %593 = vmatprep.subr.mxu0 0.0
    %594 = vmatpush1.msra.mxu0 0.0
    %595 = vmatprep.subr.mxu0 0.0
    %596 = vmatpush1.msra.mxu0 0.0
    %597 = vmatprep.subr.mxu0 0.0
    %598 = vmatpush1.msra.mxu0 0.0
    %599 = vmatprep.subr.mxu0 0.0
    %600 = vmatpush1.msra.mxu0 0.0
    %601 = vmatprep.subr.mxu0 0.0
    %602 = vmatpush1.msra.mxu0 0.0
    %603 = vmatprep.subr.mxu0 0.0
    %604 = vmatpush1.msra.mxu0 0.0
    %605 = vmatprep.subr.mxu0 0.0
    %606 = vmatpush1.msra.mxu0 0.0
    %607 = vmatprep.subr.mxu0 0.0
    %608 = vmatpush1.msra.mxu0 0.0
    %609 = vmatprep.subr.mxu0 0.0
    %610 = vmatpush1.msra.mxu0 0.0
    %611 = vmatprep.subr.mxu0 0.0
    %612 = vmatpush1.msra.mxu0 0.0
    %613 = vmatprep.subr.mxu0 0.0
    %614 = vmatpush1.msra.mxu0 0.0
    %615 = vmatprep.subr.mxu0 0.0
    %616 = vmatpush1.msra.mxu0 0.0
    %617 = vmatprep.subr.mxu0 0.0
    %618 = vmatpush1.msra.mxu0 0.0
    %619 = vmatprep.subr.mxu0 0.0
    %620 = vmatpush1.msra.mxu0 0.0
    %621 = vmatprep.subr.mxu0 0.0
    %622 = vmatpush1.msra.mxu0 0.0
    %623 = vmatprep.subr.mxu0 0.0
    %624 = vmatpush1.msra.mxu0 0.0
    %625 = vmatprep.subr.mxu0 0.0
    %626 = vmatpush1.msra.mxu0 0.0
    %627 = vmatprep.subr.mxu0 0.0
    %628 = vmatpush1.msra.mxu0 0.0
    %629 = vmatprep.subr.mxu0 0.0
    %630 = vmatpush1.msra.mxu0 0.0
    %631 = vmatprep.mubr.f32.mxu0 0.0
    %632 = vmatmul.mubr.f32.gmra.mrb[0].mxu0 %v565
    %v633 = vpop.f32.mrb[0].mxu0
    %v634 = vadd.f32 0.0, %v633
    %v635 = vpop.f32.mrb[0].mxu0
    %636 = vdwg.mxu0
    %637 = vset.pattern.permute.xlu0 1
    %638 = vperm.xlu0 %637, %v189
    %v639 = vpop.permute.xlu0 %638
    %v641 = vlaneseq
    %v642 = vshrl.u32 %v641, 7
    %v643 = vsub.s32 1, %v642
    %v644 = vrot.slane %v430, %v643
    %v645 = vadd.f32 %v639, %v644
    %646 = vset.pattern.permute.xlu0 1
    %647 = vperm.xlu0 %646, %v458
    %v648 = vpop.permute.xlu0 %647
    %649 = vset.pattern.permute.xlu0 1
    %650 = vperm.xlu0 %649, %v459
    %v651 = vpop.permute.xlu0 %650
    %652 = vset.pattern.permute.xlu0 1
    %653 = vperm.xlu0 %652, %v460
    %v654 = vpop.permute.xlu0 %653
    %655 = vset.pattern.permute.xlu0 1
    %656 = vperm.xlu0 %655, %v461
    %v657 = vpop.permute.xlu0 %656
    %658 = vset.pattern.permute.xlu0 1
    %659 = vperm.xlu0 %658, %v462
    %v660 = vpop.permute.xlu0 %659
    %661 = vset.pattern.permute.xlu0 1
    %662 = vperm.xlu0 %661, %v463
    %v663 = vpop.permute.xlu0 %662
    %664 = vset.pattern.permute.xlu0 1
    %665 = vperm.xlu0 %664, %v464
    %v666 = vpop.permute.xlu0 %665
    %667 = vset.pattern.permute.xlu0 1
    %668 = vperm.xlu0 %667, %v465
    %v669 = vpop.permute.xlu0 %668
    %v670 = vlaneseq
    %v671 = vshrl.u32 %v670, 7
    %v672 = vsub.s32 %v499, %v671
    %v673 = vrot.slane %v648, %v672
    %v674 = vlaneseq
    %v675 = vshrl.u32 %v674, 7
    %v676 = vsub.s32 %v499, %v675
    %v677 = vrot.slane %v651, %v676
    %v678 = vlaneseq
    %v679 = vshrl.u32 %v678, 7
    %v680 = vsub.s32 %v499, %v679
    %v681 = vrot.slane %v654, %v680
    %v682 = vlaneseq
    %v683 = vshrl.u32 %v682, 7
    %v684 = vsub.s32 %v499, %v683
    %v685 = vrot.slane %v657, %v684
    %v686 = vlaneseq
    %v687 = vshrl.u32 %v686, 7
    %v688 = vsub.s32 %v499, %v687
    %v689 = vrot.slane %v660, %v688
    %v690 = vlaneseq
    %v691 = vshrl.u32 %v690, 7
    %v692 = vsub.s32 %v499, %v691
    %v693 = vrot.slane %v663, %v692
    %v694 = vlaneseq
    %v695 = vshrl.u32 %v694, 7
    %v696 = vsub.s32 %v499, %v695
    %v697 = vrot.slane %v666, %v696
    %v698 = vlaneseq
    %v699 = vshrl.u32 %v698, 7
    %v700 = vsub.s32 %v499, %v699
    %v701 = vrot.slane %v669, %v700
    %v702 = vsel %vm532, %v677, %v673
    %v703 = vsel %vm534, %v681, %v702
    %v704 = vsel %vm536, %v685, %v703
    %v705 = vsel %vm538, %v689, %v704
    %v706 = vsel %vm540, %v693, %v705
    %v707 = vsel %vm542, %v697, %v706
    %v708 = vsel %vm544, %v701, %v707
    %v710 = vadd.f32 %v645, %v708
    %vm711 = vcmp.ge.f32.partialorder %v710, 0.0
    %v712 = vmul.f32 %v710, 0.2
    %v713 = vsel %vm711, %v710, %v712
    %v714 = vadd.f32 %v713, %v448
    %v715 = vsel %vm552, %v714, -inf
    %716 = vmax.xlane.f32.xlu0 %v715
    %v717 = vpop.xlane.xlu0 %716
    %v718 = vsub.f32 %v714, %v717
    %v719 = vmul.f32 %v718, 1.442695
    %v720 = vpow.pop %v719
    %v721 = vsel %vm552, %v720, 0.0
    %722 = vadd.xlane.f32.xlu0 %v721
    %v723 = vpop.xlane.xlu0 %722
    %v724 = vrcp.pop %v723
    %v725 = vmul.f32 %v720, %v724
    %726 = vrot.lane.b32.xlu0 %v104, 120
    %v727 = vpop.permute.xlu0 %726
    %v730 = vsel %vm552, %v725, 0
    %732 = vmatprep.subr.mxu0 0.0
    %733 = vmatpush1.msra.mxu0 %v727
    %734 = vmatprep.subr.mxu0 0.0
    %735 = vmatpush1.msra.mxu0 0.0
    %736 = vmatprep.subr.mxu0 0.0
    %737 = vmatpush1.msra.mxu0 0.0
    %738 = vmatprep.subr.mxu0 0.0
    %739 = vmatpush1.msra.mxu0 0.0
    %740 = vmatprep.subr.mxu0 0.0
    %741 = vmatpush1.msra.mxu0 0.0
    %742 = vmatprep.subr.mxu0 0.0
    %743 = vmatpush1.msra.mxu0 0.0
    %744 = vmatprep.subr.mxu0 0.0
    %745 = vmatpush1.msra.mxu0 0.0
    %746 = vmatprep.subr.mxu0 0.0
    %747 = vmatpush1.msra.mxu0 0.0
    %748 = vmatprep.subr.mxu0 0.0
    %749 = vmatpush1.msra.mxu0 0.0
    %750 = vmatprep.subr.mxu0 0.0
    %751 = vmatpush1.msra.mxu0 0.0
    %752 = vmatprep.subr.mxu0 0.0
    %753 = vmatpush1.msra.mxu0 0.0
    %754 = vmatprep.subr.mxu0 0.0
    %755 = vmatpush1.msra.mxu0 0.0
    %756 = vmatprep.subr.mxu0 0.0
    %757 = vmatpush1.msra.mxu0 0.0
    %758 = vmatprep.subr.mxu0 0.0
    %759 = vmatpush1.msra.mxu0 0.0
    %760 = vmatprep.subr.mxu0 0.0
    %761 = vmatpush1.msra.mxu0 0.0
    %762 = vmatprep.subr.mxu0 0.0
    %763 = vmatpush1.msra.mxu0 0.0
    %764 = vmatprep.subr.mxu0 0.0
    %765 = vmatpush1.msra.mxu0 0.0
    %766 = vmatprep.subr.mxu0 0.0
    %767 = vmatpush1.msra.mxu0 0.0
    %768 = vmatprep.subr.mxu0 0.0
    %769 = vmatpush1.msra.mxu0 0.0
    %770 = vmatprep.subr.mxu0 0.0
    %771 = vmatpush1.msra.mxu0 0.0
    %772 = vmatprep.subr.mxu0 0.0
    %773 = vmatpush1.msra.mxu0 0.0
    %774 = vmatprep.subr.mxu0 0.0
    %775 = vmatpush1.msra.mxu0 0.0
    %776 = vmatprep.subr.mxu0 0.0
    %777 = vmatpush1.msra.mxu0 0.0
    %778 = vmatprep.subr.mxu0 0.0
    %779 = vmatpush1.msra.mxu0 0.0
    %780 = vmatprep.subr.mxu0 0.0
    %781 = vmatpush1.msra.mxu0 0.0
    %782 = vmatprep.subr.mxu0 0.0
    %783 = vmatpush1.msra.mxu0 0.0
    %784 = vmatprep.subr.mxu0 0.0
    %785 = vmatpush1.msra.mxu0 0.0
    %786 = vmatprep.subr.mxu0 0.0
    %787 = vmatpush1.msra.mxu0 0.0
    %788 = vmatprep.subr.mxu0 0.0
    %789 = vmatpush1.msra.mxu0 0.0
    %790 = vmatprep.subr.mxu0 0.0
    %791 = vmatpush1.msra.mxu0 0.0
    %792 = vmatprep.subr.mxu0 0.0
    %793 = vmatpush1.msra.mxu0 0.0
    %794 = vmatprep.subr.mxu0 0.0
    %795 = vmatpush1.msra.mxu0 0.0
    %796 = vmatprep.mubr.f32.mxu0 0.0
    %797 = vmatmul.mubr.f32.gmra.mrb[0].mxu0 %v730
    %v798 = vpop.f32.mrb[0].mxu0
    %v799 = vadd.f32 0.0, %v798
    %v800 = vpop.f32.mrb[0].mxu0
    %801 = vdwg.mxu0
    %802 = vset.pattern.permute.xlu0 2
    %803 = vperm.xlu0 %802, %v189
    %v804 = vpop.permute.xlu0 %803
    %v806 = vlaneseq
    %v807 = vshrl.u32 %v806, 7
    %v808 = vsub.s32 2, %v807
    %v809 = vrot.slane %v430, %v808
    %v810 = vadd.f32 %v804, %v809
    %811 = vset.pattern.permute.xlu0 2
    %812 = vperm.xlu0 %811, %v458
    %v813 = vpop.permute.xlu0 %812
    %814 = vset.pattern.permute.xlu0 2
    %815 = vperm.xlu0 %814, %v459
    %v816 = vpop.permute.xlu0 %815
    %817 = vset.pattern.permute.xlu0 2
    %818 = vperm.xlu0 %817, %v460
    %v819 = vpop.permute.xlu0 %818
    %820 = vset.pattern.permute.xlu0 2
    %821 = vperm.xlu0 %820, %v461
    %v822 = vpop.permute.xlu0 %821
    %823 = vset.pattern.permute.xlu0 2
    %824 = vperm.xlu0 %823, %v462
    %v825 = vpop.permute.xlu0 %824
    %826 = vset.pattern.permute.xlu0 2
    %827 = vperm.xlu0 %826, %v463
    %v828 = vpop.permute.xlu0 %827
    %829 = vset.pattern.permute.xlu0 2
    %830 = vperm.xlu0 %829, %v464
    %v831 = vpop.permute.xlu0 %830
    %832 = vset.pattern.permute.xlu0 2
    %833 = vperm.xlu0 %832, %v465
    %v834 = vpop.permute.xlu0 %833
    %v835 = vlaneseq
    %v836 = vshrl.u32 %v835, 7
    %v837 = vsub.s32 %v499, %v836
    %v838 = vrot.slane %v813, %v837
    %v839 = vlaneseq
    %v840 = vshrl.u32 %v839, 7
    %v841 = vsub.s32 %v499, %v840
    %v842 = vrot.slane %v816, %v841
    %v843 = vlaneseq
    %v844 = vshrl.u32 %v843, 7
    %v845 = vsub.s32 %v499, %v844
    %v846 = vrot.slane %v819, %v845
    %v847 = vlaneseq
    %v848 = vshrl.u32 %v847, 7
    %v849 = vsub.s32 %v499, %v848
    %v850 = vrot.slane %v822, %v849
    %v851 = vlaneseq
    %v852 = vshrl.u32 %v851, 7
    %v853 = vsub.s32 %v499, %v852
    %v854 = vrot.slane %v825, %v853
    %v855 = vlaneseq
    %v856 = vshrl.u32 %v855, 7
    %v857 = vsub.s32 %v499, %v856
    %v858 = vrot.slane %v828, %v857
    %v859 = vlaneseq
    %v860 = vshrl.u32 %v859, 7
    %v861 = vsub.s32 %v499, %v860
    %v862 = vrot.slane %v831, %v861
    %v863 = vlaneseq
    %v864 = vshrl.u32 %v863, 7
    %v865 = vsub.s32 %v499, %v864
    %v866 = vrot.slane %v834, %v865
    %v867 = vsel %vm532, %v842, %v838
    %v868 = vsel %vm534, %v846, %v867
    %v869 = vsel %vm536, %v850, %v868
    %v870 = vsel %vm538, %v854, %v869
    %v871 = vsel %vm540, %v858, %v870
    %v872 = vsel %vm542, %v862, %v871
    %v873 = vsel %vm544, %v866, %v872
    %v875 = vadd.f32 %v810, %v873
    %vm876 = vcmp.ge.f32.partialorder %v875, 0.0
    %v877 = vmul.f32 %v875, 0.2
    %v878 = vsel %vm876, %v875, %v877
    %v879 = vadd.f32 %v878, %v448
    %v880 = vsel %vm552, %v879, -inf
    %881 = vmax.xlane.f32.xlu0 %v880
    %v882 = vpop.xlane.xlu0 %881
    %v883 = vsub.f32 %v879, %v882
    %v884 = vmul.f32 %v883, 1.442695
    %v885 = vpow.pop %v884
    %v886 = vsel %vm552, %v885, 0.0
    %887 = vadd.xlane.f32.xlu0 %v886
    %v888 = vpop.xlane.xlu0 %887
    %v889 = vrcp.pop %v888
    %v890 = vmul.f32 %v885, %v889
    %891 = vrot.lane.b32.xlu0 %v104, 112
    %v892 = vpop.permute.xlu0 %891
    %v895 = vsel %vm552, %v890, 0
    %897 = vmatprep.subr.mxu0 0.0
    %898 = vmatpush1.msra.mxu0 %v892
    %899 = vmatprep.subr.mxu0 0.0
    %900 = vmatpush1.msra.mxu0 0.0
    %901 = vmatprep.subr.mxu0 0.0
    %902 = vmatpush1.msra.mxu0 0.0
    %903 = vmatprep.subr.mxu0 0.0
    %904 = vmatpush1.msra.mxu0 0.0
    %905 = vmatprep.subr.mxu0 0.0
    %906 = vmatpush1.msra.mxu0 0.0
    %907 = vmatprep.subr.mxu0 0.0
    %908 = vmatpush1.msra.mxu0 0.0
    %909 = vmatprep.subr.mxu0 0.0
    %910 = vmatpush1.msra.mxu0 0.0
    %911 = vmatprep.subr.mxu0 0.0
    %912 = vmatpush1.msra.mxu0 0.0
    %913 = vmatprep.subr.mxu0 0.0
    %914 = vmatpush1.msra.mxu0 0.0
    %915 = vmatprep.subr.mxu0 0.0
    %916 = vmatpush1.msra.mxu0 0.0
    %917 = vmatprep.subr.mxu0 0.0
    %918 = vmatpush1.msra.mxu0 0.0
    %919 = vmatprep.subr.mxu0 0.0
    %920 = vmatpush1.msra.mxu0 0.0
    %921 = vmatprep.subr.mxu0 0.0
    %922 = vmatpush1.msra.mxu0 0.0
    %923 = vmatprep.subr.mxu0 0.0
    %924 = vmatpush1.msra.mxu0 0.0
    %925 = vmatprep.subr.mxu0 0.0
    %926 = vmatpush1.msra.mxu0 0.0
    %927 = vmatprep.subr.mxu0 0.0
    %928 = vmatpush1.msra.mxu0 0.0
    %929 = vmatprep.subr.mxu0 0.0
    %930 = vmatpush1.msra.mxu0 0.0
    %931 = vmatprep.subr.mxu0 0.0
    %932 = vmatpush1.msra.mxu0 0.0
    %933 = vmatprep.subr.mxu0 0.0
    %934 = vmatpush1.msra.mxu0 0.0
    %935 = vmatprep.subr.mxu0 0.0
    %936 = vmatpush1.msra.mxu0 0.0
    %937 = vmatprep.subr.mxu0 0.0
    %938 = vmatpush1.msra.mxu0 0.0
    %939 = vmatprep.subr.mxu0 0.0
    %940 = vmatpush1.msra.mxu0 0.0
    %941 = vmatprep.subr.mxu0 0.0
    %942 = vmatpush1.msra.mxu0 0.0
    %943 = vmatprep.subr.mxu0 0.0
    %944 = vmatpush1.msra.mxu0 0.0
    %945 = vmatprep.subr.mxu0 0.0
    %946 = vmatpush1.msra.mxu0 0.0
    %947 = vmatprep.subr.mxu0 0.0
    %948 = vmatpush1.msra.mxu0 0.0
    %949 = vmatprep.subr.mxu0 0.0
    %950 = vmatpush1.msra.mxu0 0.0
    %951 = vmatprep.subr.mxu0 0.0
    %952 = vmatpush1.msra.mxu0 0.0
    %953 = vmatprep.subr.mxu0 0.0
    %954 = vmatpush1.msra.mxu0 0.0
    %955 = vmatprep.subr.mxu0 0.0
    %956 = vmatpush1.msra.mxu0 0.0
    %957 = vmatprep.subr.mxu0 0.0
    %958 = vmatpush1.msra.mxu0 0.0
    %959 = vmatprep.subr.mxu0 0.0
    %960 = vmatpush1.msra.mxu0 0.0
    %961 = vmatprep.mubr.f32.mxu0 0.0
    %962 = vmatmul.mubr.f32.gmra.mrb[0].mxu0 %v895
    %v963 = vpop.f32.mrb[0].mxu0
    %v964 = vadd.f32 0.0, %v963
    %v965 = vpop.f32.mrb[0].mxu0
    %966 = vdwg.mxu0
    %967 = vset.pattern.permute.xlu0 3
    %968 = vperm.xlu0 %967, %v189
    %v969 = vpop.permute.xlu0 %968
    %v971 = vlaneseq
    %v972 = vshrl.u32 %v971, 7
    %v973 = vsub.s32 3, %v972
    %v974 = vrot.slane %v430, %v973
    %v975 = vadd.f32 %v969, %v974
    %976 = vset.pattern.permute.xlu0 3
    %977 = vperm.xlu0 %976, %v458
    %v978 = vpop.permute.xlu0 %977
    %979 = vset.pattern.permute.xlu0 3
    %980 = vperm.xlu0 %979, %v459
    %v981 = vpop.permute.xlu0 %980
    %982 = vset.pattern.permute.xlu0 3
    %983 = vperm.xlu0 %982, %v460
    %v984 = vpop.permute.xlu0 %983
    %985 = vset.pattern.permute.xlu0 3
    %986 = vperm.xlu0 %985, %v461
    %v987 = vpop.permute.xlu0 %986
    %988 = vset.pattern.permute.xlu0 3
    %989 = vperm.xlu0 %988, %v462
    %v990 = vpop.permute.xlu0 %989
    %991 = vset.pattern.permute.xlu0 3
    %992 = vperm.xlu0 %991, %v463
    %v993 = vpop.permute.xlu0 %992
    %994 = vset.pattern.permute.xlu0 3
    %995 = vperm.xlu0 %994, %v464
    %v996 = vpop.permute.xlu0 %995
    %997 = vset.pattern.permute.xlu0 3
    %998 = vperm.xlu0 %997, %v465
    %v999 = vpop.permute.xlu0 %998
    %v1000 = vlaneseq
    %v1001 = vshrl.u32 %v1000, 7
    %v1002 = vsub.s32 %v499, %v1001
    %v1003 = vrot.slane %v978, %v1002
    %v1004 = vlaneseq
    %v1005 = vshrl.u32 %v1004, 7
    %v1006 = vsub.s32 %v499, %v1005
    %v1007 = vrot.slane %v981, %v1006
    %v1008 = vlaneseq
    %v1009 = vshrl.u32 %v1008, 7
    %v1010 = vsub.s32 %v499, %v1009
    %v1011 = vrot.slane %v984, %v1010
    %v1012 = vlaneseq
    %v1013 = vshrl.u32 %v1012, 7
    %v1014 = vsub.s32 %v499, %v1013
    %v1015 = vrot.slane %v987, %v1014
    %v1016 = vlaneseq
    %v1017 = vshrl.u32 %v1016, 7
    %v1018 = vsub.s32 %v499, %v1017
    %v1019 = vrot.slane %v990, %v1018
    %v1020 = vlaneseq
    %v1021 = vshrl.u32 %v1020, 7
    %v1022 = vsub.s32 %v499, %v1021
    %v1023 = vrot.slane %v993, %v1022
    %v1024 = vlaneseq
    %v1025 = vshrl.u32 %v1024, 7
    %v1026 = vsub.s32 %v499, %v1025
    %v1027 = vrot.slane %v996, %v1026
    %v1028 = vlaneseq
    %v1029 = vshrl.u32 %v1028, 7
    %v1030 = vsub.s32 %v499, %v1029
    %v1031 = vrot.slane %v999, %v1030
    %v1032 = vsel %vm532, %v1007, %v1003
    %v1033 = vsel %vm534, %v1011, %v1032
    %v1034 = vsel %vm536, %v1015, %v1033
    %v1035 = vsel %vm538, %v1019, %v1034
    %v1036 = vsel %vm540, %v1023, %v1035
    %v1037 = vsel %vm542, %v1027, %v1036
    %v1038 = vsel %vm544, %v1031, %v1037
    %v1040 = vadd.f32 %v975, %v1038
    %vm1041 = vcmp.ge.f32.partialorder %v1040, 0.0
    %v1042 = vmul.f32 %v1040, 0.2
    %v1043 = vsel %vm1041, %v1040, %v1042
    %v1044 = vadd.f32 %v1043, %v448
    %v1045 = vsel %vm552, %v1044, -inf
    %1046 = vmax.xlane.f32.xlu0 %v1045
    %v1047 = vpop.xlane.xlu0 %1046
    %v1048 = vsub.f32 %v1044, %v1047
    %v1049 = vmul.f32 %v1048, 1.442695
    %v1050 = vpow.pop %v1049
    %v1051 = vsel %vm552, %v1050, 0.0
    %1052 = vadd.xlane.f32.xlu0 %v1051
    %v1053 = vpop.xlane.xlu0 %1052
    %v1054 = vrcp.pop %v1053
    %v1055 = vmul.f32 %v1050, %v1054
    %1056 = vrot.lane.b32.xlu0 %v104, 104
    %v1057 = vpop.permute.xlu0 %1056
    %v1060 = vsel %vm552, %v1055, 0
    %1062 = vmatprep.subr.mxu0 0.0
    %1063 = vmatpush1.msra.mxu0 %v1057
    %1064 = vmatprep.subr.mxu0 0.0
    %1065 = vmatpush1.msra.mxu0 0.0
    %1066 = vmatprep.subr.mxu0 0.0
    %1067 = vmatpush1.msra.mxu0 0.0
    %1068 = vmatprep.subr.mxu0 0.0
    %1069 = vmatpush1.msra.mxu0 0.0
    %1070 = vmatprep.subr.mxu0 0.0
    %1071 = vmatpush1.msra.mxu0 0.0
    %1072 = vmatprep.subr.mxu0 0.0
    %1073 = vmatpush1.msra.mxu0 0.0
    %1074 = vmatprep.subr.mxu0 0.0
    %1075 = vmatpush1.msra.mxu0 0.0
    %1076 = vmatprep.subr.mxu0 0.0
    %1077 = vmatpush1.msra.mxu0 0.0
    %1078 = vmatprep.subr.mxu0 0.0
    %1079 = vmatpush1.msra.mxu0 0.0
    %1080 = vmatprep.subr.mxu0 0.0
    %1081 = vmatpush1.msra.mxu0 0.0
    %1082 = vmatprep.subr.mxu0 0.0
    %1083 = vmatpush1.msra.mxu0 0.0
    %1084 = vmatprep.subr.mxu0 0.0
    %1085 = vmatpush1.msra.mxu0 0.0
    %1086 = vmatprep.subr.mxu0 0.0
    %1087 = vmatpush1.msra.mxu0 0.0
    %1088 = vmatprep.subr.mxu0 0.0
    %1089 = vmatpush1.msra.mxu0 0.0
    %1090 = vmatprep.subr.mxu0 0.0
    %1091 = vmatpush1.msra.mxu0 0.0
    %1092 = vmatprep.subr.mxu0 0.0
    %1093 = vmatpush1.msra.mxu0 0.0
    %1094 = vmatprep.subr.mxu0 0.0
    %1095 = vmatpush1.msra.mxu0 0.0
    %1096 = vmatprep.subr.mxu0 0.0
    %1097 = vmatpush1.msra.mxu0 0.0
    %1098 = vmatprep.subr.mxu0 0.0
    %1099 = vmatpush1.msra.mxu0 0.0
    %1100 = vmatprep.subr.mxu0 0.0
    %1101 = vmatpush1.msra.mxu0 0.0
    %1102 = vmatprep.subr.mxu0 0.0
    %1103 = vmatpush1.msra.mxu0 0.0
    %1104 = vmatprep.subr.mxu0 0.0
    %1105 = vmatpush1.msra.mxu0 0.0
    %1106 = vmatprep.subr.mxu0 0.0
    %1107 = vmatpush1.msra.mxu0 0.0
    %1108 = vmatprep.subr.mxu0 0.0
    %1109 = vmatpush1.msra.mxu0 0.0
    %1110 = vmatprep.subr.mxu0 0.0
    %1111 = vmatpush1.msra.mxu0 0.0
    %1112 = vmatprep.subr.mxu0 0.0
    %1113 = vmatpush1.msra.mxu0 0.0
    %1114 = vmatprep.subr.mxu0 0.0
    %1115 = vmatpush1.msra.mxu0 0.0
    %1116 = vmatprep.subr.mxu0 0.0
    %1117 = vmatpush1.msra.mxu0 0.0
    %1118 = vmatprep.subr.mxu0 0.0
    %1119 = vmatpush1.msra.mxu0 0.0
    %1120 = vmatprep.subr.mxu0 0.0
    %1121 = vmatpush1.msra.mxu0 0.0
    %1122 = vmatprep.subr.mxu0 0.0
    %1123 = vmatpush1.msra.mxu0 0.0
    %1124 = vmatprep.subr.mxu0 0.0
    %1125 = vmatpush1.msra.mxu0 0.0
    %1126 = vmatprep.mubr.f32.mxu0 0.0
    %1127 = vmatmul.mubr.f32.gmra.mrb[0].mxu0 %v1060
    %v1128 = vpop.f32.mrb[0].mxu0
    %v1129 = vadd.f32 0.0, %v1128
    %v1130 = vpop.f32.mrb[0].mxu0
    %1131 = vdwg.mxu0
    %1133 = vrot.lane.b32.xlu0 %v799, 8
    %v1134 = vpop.permute.xlu0 %1133
    %1137 = vrot.lane.b32.xlu0 %v964, 16
    %v1138 = vpop.permute.xlu0 %1137
    %1141 = vrot.lane.b32.xlu0 %v1129, 24
    %v1142 = vpop.permute.xlu0 %1141
    %v1144 = vsel %vm552, %v634, %v1134
    %vm1145 = vcmask 130048
    %v1146 = vsel %vm1145, %v1144, %v1138
    %vm1147 = vcmask 195584
    %v1148 = vsel %vm1147, %v1146, %v1142
    %1149 = vst.msk [vmem:[#allocation2] sm:$0xff] %vm30, %v1148
    %1151 = vrot.lane.b32.xlu0 %v194, 124
    %v1152 = vpop.permute.xlu0 %1151
    %1154 = vxpose.xlu0.b32.start [1/16] %v1152, 128
    %1155 = vxpose.xlu0.b32.cont [2/16] 0.0, 128
    %1156 = vxpose.xlu0.b32.cont [3/16] 0.0, 128
    %1157 = vxpose.xlu0.b32.cont [4/16] 0.0, 128
    %1158 = vxpose.xlu0.b32.cont [5/16] 0.0, 128
    %1159 = vxpose.xlu0.b32.cont [6/16] 0.0, 128
    %1160 = vxpose.xlu0.b32.cont [7/16] 0.0, 128
    %1161 = vxpose.xlu0.b32.cont [8/16] 0.0, 128
    %1162 = vxpose.xlu0.b32.cont [9/16] 0.0, 128
    %1163 = vxpose.xlu0.b32.cont [10/16] 0.0, 128
    %1164 = vxpose.xlu0.b32.cont [11/16] 0.0, 128
    %1165 = vxpose.xlu0.b32.cont [12/16] 0.0, 128
    %1166 = vxpose.xlu0.b32.cont [13/16] 0.0, 128
    %1167 = vxpose.xlu0.b32.cont [14/16] 0.0, 128
    %1168 = vxpose.xlu0.b32.cont [15/16] 0.0, 128
    %1169 = vxpose.xlu0.b32.end [16/16] 0.0, 128
    %v1170 = vpop.trf.xlu0
    %v1171 = vpop.trf.xlu0
    %v1172 = vpop.trf.xlu0
    %v1173 = vpop.trf.xlu0
    %v1174 = vpop.trf.xlu0
    %v1175 = vpop.trf.xlu0
    %v1176 = vpop.trf.xlu0
    %v1177 = vpop.trf.xlu0
    %v1178 = vpop.trf.xlu0
    %v1179 = vpop.trf.xlu0
    %v1180 = vpop.trf.xlu0
    %v1181 = vpop.trf.xlu0
    %v1182 = vpop.trf.xlu0
    %v1183 = vpop.trf.xlu0
    %v1184 = vpop.trf.xlu0
    %v1185 = vpop.trf.xlu0
    %s1186 = scalar_lea.vmem %s2, 8
    %v1187 = vld [vmem:[%s1186] sm:$0xff]
    %vm1188 = vcmp.ne.f32.partialorder %v1187, 0.0
    %v1189 = vsel %vm1188, 0.0, -1e+30
    %1190 = vset.pattern.permute.xlu0 0
    %1191 = vperm.xlu0 %1190, %v194
    %v1192 = vpop.permute.xlu0 %1191
    %v1194 = vlaneseq
    %v1195 = vshrl.u32 %v1194, 7
    %v1196 = vsub.s32 0, %v1195
    %v1197 = vrot.slane %v1170, %v1196
    %v1198 = vadd.f32 %v1192, %v1197
    %v1199 = vadd.f32 %v372, 0.0
    %v1200 = vadd.f32 %v377, 0.0
    %v1201 = vadd.f32 %v382, 0.0
    %v1202 = vadd.f32 %v387, 0.0
    %v1203 = vadd.f32 %v392, 0.0
    %v1204 = vadd.f32 %v397, 0.0
    %v1205 = vadd.f32 %v402, 0.0
    %v1206 = vadd.f32 %v407, 0.0
    %1215 = vset.pattern.permute.xlu0 0
    %1216 = vperm.xlu0 %1215, %v1199
    %v1217 = vpop.permute.xlu0 %1216
    %1218 = vset.pattern.permute.xlu0 0
    %1219 = vperm.xlu0 %1218, %v1200
    %v1220 = vpop.permute.xlu0 %1219
    %1221 = vset.pattern.permute.xlu0 0
    %1222 = vperm.xlu0 %1221, %v1201
    %v1223 = vpop.permute.xlu0 %1222
    %1224 = vset.pattern.permute.xlu0 0
    %1225 = vperm.xlu0 %1224, %v1202
    %v1226 = vpop.permute.xlu0 %1225
    %1227 = vset.pattern.permute.xlu0 0
    %1228 = vperm.xlu0 %1227, %v1203
    %v1229 = vpop.permute.xlu0 %1228
    %1230 = vset.pattern.permute.xlu0 0
    %1231 = vperm.xlu0 %1230, %v1204
    %v1232 = vpop.permute.xlu0 %1231
    %1233 = vset.pattern.permute.xlu0 0
    %1234 = vperm.xlu0 %1233, %v1205
    %v1235 = vpop.permute.xlu0 %1234
    %1236 = vset.pattern.permute.xlu0 0
    %1237 = vperm.xlu0 %1236, %v1206
    %v1238 = vpop.permute.xlu0 %1237
    %v1239 = vlaneseq
    %v1240 = vshrl.u32 %v1239, 7
    %v1241 = vsub.s32 %v499, %v1240
    %v1242 = vrot.slane %v1217, %v1241
    %v1243 = vlaneseq
    %v1244 = vshrl.u32 %v1243, 7
    %v1245 = vsub.s32 %v499, %v1244
    %v1246 = vrot.slane %v1220, %v1245
    %v1247 = vlaneseq
    %v1248 = vshrl.u32 %v1247, 7
    %v1249 = vsub.s32 %v499, %v1248
    %v1250 = vrot.slane %v1223, %v1249
    %v1251 = vlaneseq
    %v1252 = vshrl.u32 %v1251, 7
    %v1253 = vsub.s32 %v499, %v1252
    %v1254 = vrot.slane %v1226, %v1253
    %v1255 = vlaneseq
    %v1256 = vshrl.u32 %v1255, 7
    %v1257 = vsub.s32 %v499, %v1256
    %v1258 = vrot.slane %v1229, %v1257
    %v1259 = vlaneseq
    %v1260 = vshrl.u32 %v1259, 7
    %v1261 = vsub.s32 %v499, %v1260
    %v1262 = vrot.slane %v1232, %v1261
    %v1263 = vlaneseq
    %v1264 = vshrl.u32 %v1263, 7
    %v1265 = vsub.s32 %v499, %v1264
    %v1266 = vrot.slane %v1235, %v1265
    %v1267 = vlaneseq
    %v1268 = vshrl.u32 %v1267, 7
    %v1269 = vsub.s32 %v499, %v1268
    %v1270 = vrot.slane %v1238, %v1269
    %v1271 = vsel %vm532, %v1246, %v1242
    %v1272 = vsel %vm534, %v1250, %v1271
    %v1273 = vsel %vm536, %v1254, %v1272
    %v1274 = vsel %vm538, %v1258, %v1273
    %v1275 = vsel %vm540, %v1262, %v1274
    %v1276 = vsel %vm542, %v1266, %v1275
    %v1277 = vsel %vm544, %v1270, %v1276
    %v1279 = vadd.f32 %v1198, %v1277
    %vm1280 = vcmp.ge.f32.partialorder %v1279, 0.0
    %v1281 = vmul.f32 %v1279, 0.2
    %v1282 = vsel %vm1280, %v1279, %v1281
    %v1283 = vadd.f32 %v1282, %v1189
    %v1284 = vsel %vm552, %v1283, -inf
    %1285 = vmax.xlane.f32.xlu0 %v1284
    %v1286 = vpop.xlane.xlu0 %1285
    %v1287 = vsub.f32 %v1283, %v1286
    %v1288 = vmul.f32 %v1287, 1.442695
    %v1289 = vpow.pop %v1288
    %v1290 = vsel %vm552, %v1289, 0.0
    %1291 = vadd.xlane.f32.xlu0 %v1290
    %v1292 = vpop.xlane.xlu0 %1291
    %v1293 = vrcp.pop %v1292
    %v1294 = vmul.f32 %v1289, %v1293
    %v1296 = vsel %vm552, %v1294, 0
    %1298 = vmatprep.subr.mxu0 0.0
    %1299 = vmatpush1.msra.mxu0 %v109
    %1300 = vmatprep.subr.mxu0 0.0
    %1301 = vmatpush1.msra.mxu0 0.0
    %1302 = vmatprep.subr.mxu0 0.0
    %1303 = vmatpush1.msra.mxu0 0.0
    %1304 = vmatprep.subr.mxu0 0.0
    %1305 = vmatpush1.msra.mxu0 0.0
    %1306 = vmatprep.subr.mxu0 0.0
    %1307 = vmatpush1.msra.mxu0 0.0
    %1308 = vmatprep.subr.mxu0 0.0
    %1309 = vmatpush1.msra.mxu0 0.0
    %1310 = vmatprep.subr.mxu0 0.0
    %1311 = vmatpush1.msra.mxu0 0.0
    %1312 = vmatprep.subr.mxu0 0.0
    %1313 = vmatpush1.msra.mxu0 0.0
    %1314 = vmatprep.subr.mxu0 0.0
    %1315 = vmatpush1.msra.mxu0 0.0
    %1316 = vmatprep.subr.mxu0 0.0
    %1317 = vmatpush1.msra.mxu0 0.0
    %1318 = vmatprep.subr.mxu0 0.0
    %1319 = vmatpush1.msra.mxu0 0.0
    %1320 = vmatprep.subr.mxu0 0.0
    %1321 = vmatpush1.msra.mxu0 0.0
    %1322 = vmatprep.subr.mxu0 0.0
    %1323 = vmatpush1.msra.mxu0 0.0
    %1324 = vmatprep.subr.mxu0 0.0
    %1325 = vmatpush1.msra.mxu0 0.0
    %1326 = vmatprep.subr.mxu0 0.0
    %1327 = vmatpush1.msra.mxu0 0.0
    %1328 = vmatprep.subr.mxu0 0.0
    %1329 = vmatpush1.msra.mxu0 0.0
    %1330 = vmatprep.subr.mxu0 0.0
    %1331 = vmatpush1.msra.mxu0 0.0
    %1332 = vmatprep.subr.mxu0 0.0
    %1333 = vmatpush1.msra.mxu0 0.0
    %1334 = vmatprep.subr.mxu0 0.0
    %1335 = vmatpush1.msra.mxu0 0.0
    %1336 = vmatprep.subr.mxu0 0.0
    %1337 = vmatpush1.msra.mxu0 0.0
    %1338 = vmatprep.subr.mxu0 0.0
    %1339 = vmatpush1.msra.mxu0 0.0
    %1340 = vmatprep.subr.mxu0 0.0
    %1341 = vmatpush1.msra.mxu0 0.0
    %1342 = vmatprep.subr.mxu0 0.0
    %1343 = vmatpush1.msra.mxu0 0.0
    %1344 = vmatprep.subr.mxu0 0.0
    %1345 = vmatpush1.msra.mxu0 0.0
    %1346 = vmatprep.subr.mxu0 0.0
    %1347 = vmatpush1.msra.mxu0 0.0
    %1348 = vmatprep.subr.mxu0 0.0
    %1349 = vmatpush1.msra.mxu0 0.0
    %1350 = vmatprep.subr.mxu0 0.0
    %1351 = vmatpush1.msra.mxu0 0.0
    %1352 = vmatprep.subr.mxu0 0.0
    %1353 = vmatpush1.msra.mxu0 0.0
    %1354 = vmatprep.subr.mxu0 0.0
    %1355 = vmatpush1.msra.mxu0 0.0
    %1356 = vmatprep.subr.mxu0 0.0
    %1357 = vmatpush1.msra.mxu0 0.0
    %1358 = vmatprep.subr.mxu0 0.0
    %1359 = vmatpush1.msra.mxu0 0.0
    %1360 = vmatprep.subr.mxu0 0.0
    %1361 = vmatpush1.msra.mxu0 0.0
    %1362 = vmatprep.mubr.f32.mxu0 0.0
    %1363 = vmatmul.mubr.f32.gmra.mrb[0].mxu0 %v1296
    %v1364 = vpop.f32.mrb[0].mxu0
    %v1365 = vadd.f32 0.0, %v1364
    %v1366 = vpop.f32.mrb[0].mxu0
    %1367 = vdwg.mxu0
    %1368 = vset.pattern.permute.xlu0 1
    %1369 = vperm.xlu0 %1368, %v194
    %v1370 = vpop.permute.xlu0 %1369
    %v1372 = vlaneseq
    %v1373 = vshrl.u32 %v1372, 7
    %v1374 = vsub.s32 1, %v1373
    %v1375 = vrot.slane %v1170, %v1374
    %v1376 = vadd.f32 %v1370, %v1375
    %1377 = vset.pattern.permute.xlu0 1
    %1378 = vperm.xlu0 %1377, %v1199
    %v1379 = vpop.permute.xlu0 %1378
    %1380 = vset.pattern.permute.xlu0 1
    %1381 = vperm.xlu0 %1380, %v1200
    %v1382 = vpop.permute.xlu0 %1381
    %1383 = vset.pattern.permute.xlu0 1
    %1384 = vperm.xlu0 %1383, %v1201
    %v1385 = vpop.permute.xlu0 %1384
    %1386 = vset.pattern.permute.xlu0 1
    %1387 = vperm.xlu0 %1386, %v1202
    %v1388 = vpop.permute.xlu0 %1387
    %1389 = vset.pattern.permute.xlu0 1
    %1390 = vperm.xlu0 %1389, %v1203
    %v1391 = vpop.permute.xlu0 %1390
    %1392 = vset.pattern.permute.xlu0 1
    %1393 = vperm.xlu0 %1392, %v1204
    %v1394 = vpop.permute.xlu0 %1393
    %1395 = vset.pattern.permute.xlu0 1
    %1396 = vperm.xlu0 %1395, %v1205
    %v1397 = vpop.permute.xlu0 %1396
    %1398 = vset.pattern.permute.xlu0 1
    %1399 = vperm.xlu0 %1398, %v1206
    %v1400 = vpop.permute.xlu0 %1399
    %v1401 = vlaneseq
    %v1402 = vshrl.u32 %v1401, 7
    %v1403 = vsub.s32 %v499, %v1402
    %v1404 = vrot.slane %v1379, %v1403
    %v1405 = vlaneseq
    %v1406 = vshrl.u32 %v1405, 7
    %v1407 = vsub.s32 %v499, %v1406
    %v1408 = vrot.slane %v1382, %v1407
    %v1409 = vlaneseq
    %v1410 = vshrl.u32 %v1409, 7
    %v1411 = vsub.s32 %v499, %v1410
    %v1412 = vrot.slane %v1385, %v1411
    %v1413 = vlaneseq
    %v1414 = vshrl.u32 %v1413, 7
    %v1415 = vsub.s32 %v499, %v1414
    %v1416 = vrot.slane %v1388, %v1415
    %v1417 = vlaneseq
    %v1418 = vshrl.u32 %v1417, 7
    %v1419 = vsub.s32 %v499, %v1418
    %v1420 = vrot.slane %v1391, %v1419
    %v1421 = vlaneseq
    %v1422 = vshrl.u32 %v1421, 7
    %v1423 = vsub.s32 %v499, %v1422
    %v1424 = vrot.slane %v1394, %v1423
    %v1425 = vlaneseq
    %v1426 = vshrl.u32 %v1425, 7
    %v1427 = vsub.s32 %v499, %v1426
    %v1428 = vrot.slane %v1397, %v1427
    %v1429 = vlaneseq
    %v1430 = vshrl.u32 %v1429, 7
    %v1431 = vsub.s32 %v499, %v1430
    %v1432 = vrot.slane %v1400, %v1431
    %v1433 = vsel %vm532, %v1408, %v1404
    %v1434 = vsel %vm534, %v1412, %v1433
    %v1435 = vsel %vm536, %v1416, %v1434
    %v1436 = vsel %vm538, %v1420, %v1435
    %v1437 = vsel %vm540, %v1424, %v1436
    %v1438 = vsel %vm542, %v1428, %v1437
    %v1439 = vsel %vm544, %v1432, %v1438
    %v1441 = vadd.f32 %v1376, %v1439
    %vm1442 = vcmp.ge.f32.partialorder %v1441, 0.0
    %v1443 = vmul.f32 %v1441, 0.2
    %v1444 = vsel %vm1442, %v1441, %v1443
    %v1445 = vadd.f32 %v1444, %v1189
    %v1446 = vsel %vm552, %v1445, -inf
    %1447 = vmax.xlane.f32.xlu0 %v1446
    %v1448 = vpop.xlane.xlu0 %1447
    %v1449 = vsub.f32 %v1445, %v1448
    %v1450 = vmul.f32 %v1449, 1.442695
    %v1451 = vpow.pop %v1450
    %v1452 = vsel %vm552, %v1451, 0.0
    %1453 = vadd.xlane.f32.xlu0 %v1452
    %v1454 = vpop.xlane.xlu0 %1453
    %v1455 = vrcp.pop %v1454
    %v1456 = vmul.f32 %v1451, %v1455
    %1457 = vrot.lane.b32.xlu0 %v109, 120
    %v1458 = vpop.permute.xlu0 %1457
    %v1461 = vsel %vm552, %v1456, 0
    %1463 = vmatprep.subr.mxu0 0.0
    %1464 = vmatpush1.msra.mxu0 %v1458
    %1465 = vmatprep.subr.mxu0 0.0
    %1466 = vmatpush1.msra.mxu0 0.0
    %1467 = vmatprep.subr.mxu0 0.0
    %1468 = vmatpush1.msra.mxu0 0.0
    %1469 = vmatprep.subr.mxu0 0.0
    %1470 = vmatpush1.msra.mxu0 0.0
    %1471 = vmatprep.subr.mxu0 0.0
    %1472 = vmatpush1.msra.mxu0 0.0
    %1473 = vmatprep.subr.mxu0 0.0
    %1474 = vmatpush1.msra.mxu0 0.0
    %1475 = vmatprep.subr.mxu0 0.0
    %1476 = vmatpush1.msra.mxu0 0.0
    %1477 = vmatprep.subr.mxu0 0.0
    %1478 = vmatpush1.msra.mxu0 0.0
    %1479 = vmatprep.subr.mxu0 0.0
    %1480 = vmatpush1.msra.mxu0 0.0
    %1481 = vmatprep.subr.mxu0 0.0
    %1482 = vmatpush1.msra.mxu0 0.0
    %1483 = vmatprep.subr.mxu0 0.0
    %1484 = vmatpush1.msra.mxu0 0.0
    %1485 = vmatprep.subr.mxu0 0.0
    %1486 = vmatpush1.msra.mxu0 0.0
    %1487 = vmatprep.subr.mxu0 0.0
    %1488 = vmatpush1.msra.mxu0 0.0
    %1489 = vmatprep.subr.mxu0 0.0
    %1490 = vmatpush1.msra.mxu0 0.0
    %1491 = vmatprep.subr.mxu0 0.0
    %1492 = vmatpush1.msra.mxu0 0.0
    %1493 = vmatprep.subr.mxu0 0.0
    %1494 = vmatpush1.msra.mxu0 0.0
    %1495 = vmatprep.subr.mxu0 0.0
    %1496 = vmatpush1.msra.mxu0 0.0
    %1497 = vmatprep.subr.mxu0 0.0
    %1498 = vmatpush1.msra.mxu0 0.0
    %1499 = vmatprep.subr.mxu0 0.0
    %1500 = vmatpush1.msra.mxu0 0.0
    %1501 = vmatprep.subr.mxu0 0.0
    %1502 = vmatpush1.msra.mxu0 0.0
    %1503 = vmatprep.subr.mxu0 0.0
    %1504 = vmatpush1.msra.mxu0 0.0
    %1505 = vmatprep.subr.mxu0 0.0
    %1506 = vmatpush1.msra.mxu0 0.0
    %1507 = vmatprep.subr.mxu0 0.0
    %1508 = vmatpush1.msra.mxu0 0.0
    %1509 = vmatprep.subr.mxu0 0.0
    %1510 = vmatpush1.msra.mxu0 0.0
    %1511 = vmatprep.subr.mxu0 0.0
    %1512 = vmatpush1.msra.mxu0 0.0
    %1513 = vmatprep.subr.mxu0 0.0
    %1514 = vmatpush1.msra.mxu0 0.0
    %1515 = vmatprep.subr.mxu0 0.0
    %1516 = vmatpush1.msra.mxu0 0.0
    %1517 = vmatprep.subr.mxu0 0.0
    %1518 = vmatpush1.msra.mxu0 0.0
    %1519 = vmatprep.subr.mxu0 0.0
    %1520 = vmatpush1.msra.mxu0 0.0
    %1521 = vmatprep.subr.mxu0 0.0
    %1522 = vmatpush1.msra.mxu0 0.0
    %1523 = vmatprep.subr.mxu0 0.0
    %1524 = vmatpush1.msra.mxu0 0.0
    %1525 = vmatprep.subr.mxu0 0.0
    %1526 = vmatpush1.msra.mxu0 0.0
    %1527 = vmatprep.mubr.f32.mxu0 0.0
    %1528 = vmatmul.mubr.f32.gmra.mrb[0].mxu0 %v1461
    %v1529 = vpop.f32.mrb[0].mxu0
    %v1530 = vadd.f32 0.0, %v1529
    %v1531 = vpop.f32.mrb[0].mxu0
    %1532 = vdwg.mxu0
    %1533 = vset.pattern.permute.xlu0 2
    %1534 = vperm.xlu0 %1533, %v194
    %v1535 = vpop.permute.xlu0 %1534
    %v1537 = vlaneseq
    %v1538 = vshrl.u32 %v1537, 7
    %v1539 = vsub.s32 2, %v1538
    %v1540 = vrot.slane %v1170, %v1539
    %v1541 = vadd.f32 %v1535, %v1540
    %1542 = vset.pattern.permute.xlu0 2
    %1543 = vperm.xlu0 %1542, %v1199
    %v1544 = vpop.permute.xlu0 %1543
    %1545 = vset.pattern.permute.xlu0 2
    %1546 = vperm.xlu0 %1545, %v1200
    %v1547 = vpop.permute.xlu0 %1546
    %1548 = vset.pattern.permute.xlu0 2
    %1549 = vperm.xlu0 %1548, %v1201
    %v1550 = vpop.permute.xlu0 %1549
    %1551 = vset.pattern.permute.xlu0 2
    %1552 = vperm.xlu0 %1551, %v1202
    %v1553 = vpop.permute.xlu0 %1552
    %1554 = vset.pattern.permute.xlu0 2
    %1555 = vperm.xlu0 %1554, %v1203
    %v1556 = vpop.permute.xlu0 %1555
    %1557 = vset.pattern.permute.xlu0 2
    %1558 = vperm.xlu0 %1557, %v1204
    %v1559 = vpop.permute.xlu0 %1558
    %1560 = vset.pattern.permute.xlu0 2
    %1561 = vperm.xlu0 %1560, %v1205
    %v1562 = vpop.permute.xlu0 %1561
    %1563 = vset.pattern.permute.xlu0 2
    %1564 = vperm.xlu0 %1563, %v1206
    %v1565 = vpop.permute.xlu0 %1564
    %v1566 = vlaneseq
    %v1567 = vshrl.u32 %v1566, 7
    %v1568 = vsub.s32 %v499, %v1567
    %v1569 = vrot.slane %v1544, %v1568
    %v1570 = vlaneseq
    %v1571 = vshrl.u32 %v1570, 7
    %v1572 = vsub.s32 %v499, %v1571
    %v1573 = vrot.slane %v1547, %v1572
    %v1574 = vlaneseq
    %v1575 = vshrl.u32 %v1574, 7
    %v1576 = vsub.s32 %v499, %v1575
    %v1577 = vrot.slane %v1550, %v1576
    %v1578 = vlaneseq
    %v1579 = vshrl.u32 %v1578, 7
    %v1580 = vsub.s32 %v499, %v1579
    %v1581 = vrot.slane %v1553, %v1580
    %v1582 = vlaneseq
    %v1583 = vshrl.u32 %v1582, 7
    %v1584 = vsub.s32 %v499, %v1583
    %v1585 = vrot.slane %v1556, %v1584
    %v1586 = vlaneseq
    %v1587 = vshrl.u32 %v1586, 7
    %v1588 = vsub.s32 %v499, %v1587
    %v1589 = vrot.slane %v1559, %v1588
    %v1590 = vlaneseq
    %v1591 = vshrl.u32 %v1590, 7
    %v1592 = vsub.s32 %v499, %v1591
    %v1593 = vrot.slane %v1562, %v1592
    %v1594 = vlaneseq
    %v1595 = vshrl.u32 %v1594, 7
    %v1596 = vsub.s32 %v499, %v1595
    %v1597 = vrot.slane %v1565, %v1596
    %v1598 = vsel %vm532, %v1573, %v1569
    %v1599 = vsel %vm534, %v1577, %v1598
    %v1600 = vsel %vm536, %v1581, %v1599
    %v1601 = vsel %vm538, %v1585, %v1600
    %v1602 = vsel %vm540, %v1589, %v1601
    %v1603 = vsel %vm542, %v1593, %v1602
    %v1604 = vsel %vm544, %v1597, %v1603
    %v1606 = vadd.f32 %v1541, %v1604
    %vm1607 = vcmp.ge.f32.partialorder %v1606, 0.0
    %v1608 = vmul.f32 %v1606, 0.2
    %v1609 = vsel %vm1607, %v1606, %v1608
    %v1610 = vadd.f32 %v1609, %v1189
    %v1611 = vsel %vm552, %v1610, -inf
    %1612 = vmax.xlane.f32.xlu0 %v1611
    %v1613 = vpop.xlane.xlu0 %1612
    %v1614 = vsub.f32 %v1610, %v1613
    %v1615 = vmul.f32 %v1614, 1.442695
    %v1616 = vpow.pop %v1615
    %v1617 = vsel %vm552, %v1616, 0.0
    %1618 = vadd.xlane.f32.xlu0 %v1617
    %v1619 = vpop.xlane.xlu0 %1618
    %v1620 = vrcp.pop %v1619
    %v1621 = vmul.f32 %v1616, %v1620
    %1622 = vrot.lane.b32.xlu0 %v109, 112
    %v1623 = vpop.permute.xlu0 %1622
    %v1626 = vsel %vm552, %v1621, 0
    %1628 = vmatprep.subr.mxu0 0.0
    %1629 = vmatpush1.msra.mxu0 %v1623
    %1630 = vmatprep.subr.mxu0 0.0
    %1631 = vmatpush1.msra.mxu0 0.0
    %1632 = vmatprep.subr.mxu0 0.0
    %1633 = vmatpush1.msra.mxu0 0.0
    %1634 = vmatprep.subr.mxu0 0.0
    %1635 = vmatpush1.msra.mxu0 0.0
    %1636 = vmatprep.subr.mxu0 0.0
    %1637 = vmatpush1.msra.mxu0 0.0
    %1638 = vmatprep.subr.mxu0 0.0
    %1639 = vmatpush1.msra.mxu0 0.0
    %1640 = vmatprep.subr.mxu0 0.0
    %1641 = vmatpush1.msra.mxu0 0.0
    %1642 = vmatprep.subr.mxu0 0.0
    %1643 = vmatpush1.msra.mxu0 0.0
    %1644 = vmatprep.subr.mxu0 0.0
    %1645 = vmatpush1.msra.mxu0 0.0
    %1646 = vmatprep.subr.mxu0 0.0
    %1647 = vmatpush1.msra.mxu0 0.0
    %1648 = vmatprep.subr.mxu0 0.0
    %1649 = vmatpush1.msra.mxu0 0.0
    %1650 = vmatprep.subr.mxu0 0.0
    %1651 = vmatpush1.msra.mxu0 0.0
    %1652 = vmatprep.subr.mxu0 0.0
    %1653 = vmatpush1.msra.mxu0 0.0
    %1654 = vmatprep.subr.mxu0 0.0
    %1655 = vmatpush1.msra.mxu0 0.0
    %1656 = vmatprep.subr.mxu0 0.0
    %1657 = vmatpush1.msra.mxu0 0.0
    %1658 = vmatprep.subr.mxu0 0.0
    %1659 = vmatpush1.msra.mxu0 0.0
    %1660 = vmatprep.subr.mxu0 0.0
    %1661 = vmatpush1.msra.mxu0 0.0
    %1662 = vmatprep.subr.mxu0 0.0
    %1663 = vmatpush1.msra.mxu0 0.0
    %1664 = vmatprep.subr.mxu0 0.0
    %1665 = vmatpush1.msra.mxu0 0.0
    %1666 = vmatprep.subr.mxu0 0.0
    %1667 = vmatpush1.msra.mxu0 0.0
    %1668 = vmatprep.subr.mxu0 0.0
    %1669 = vmatpush1.msra.mxu0 0.0
    %1670 = vmatprep.subr.mxu0 0.0
    %1671 = vmatpush1.msra.mxu0 0.0
    %1672 = vmatprep.subr.mxu0 0.0
    %1673 = vmatpush1.msra.mxu0 0.0
    %1674 = vmatprep.subr.mxu0 0.0
    %1675 = vmatpush1.msra.mxu0 0.0
    %1676 = vmatprep.subr.mxu0 0.0
    %1677 = vmatpush1.msra.mxu0 0.0
    %1678 = vmatprep.subr.mxu0 0.0
    %1679 = vmatpush1.msra.mxu0 0.0
    %1680 = vmatprep.subr.mxu0 0.0
    %1681 = vmatpush1.msra.mxu0 0.0
    %1682 = vmatprep.subr.mxu0 0.0
    %1683 = vmatpush1.msra.mxu0 0.0
    %1684 = vmatprep.subr.mxu0 0.0
    %1685 = vmatpush1.msra.mxu0 0.0
    %1686 = vmatprep.subr.mxu0 0.0
    %1687 = vmatpush1.msra.mxu0 0.0
    %1688 = vmatprep.subr.mxu0 0.0
    %1689 = vmatpush1.msra.mxu0 0.0
    %1690 = vmatprep.subr.mxu0 0.0
    %1691 = vmatpush1.msra.mxu0 0.0
    %1692 = vmatprep.mubr.f32.mxu0 0.0
    %1693 = vmatmul.mubr.f32.gmra.mrb[0].mxu0 %v1626
    %v1694 = vpop.f32.mrb[0].mxu0
    %v1695 = vadd.f32 0.0, %v1694
    %v1696 = vpop.f32.mrb[0].mxu0
    %1697 = vdwg.mxu0
    %1698 = vset.pattern.permute.xlu0 3
    %1699 = vperm.xlu0 %1698, %v194
    %v1700 = vpop.permute.xlu0 %1699
    %v1702 = vlaneseq
    %v1703 = vshrl.u32 %v1702, 7
    %v1704 = vsub.s32 3, %v1703
    %v1705 = vrot.slane %v1170, %v1704
    %v1706 = vadd.f32 %v1700, %v1705
    %1707 = vset.pattern.permute.xlu0 3
    %1708 = vperm.xlu0 %1707, %v1199
    %v1709 = vpop.permute.xlu0 %1708
    %1710 = vset.pattern.permute.xlu0 3
    %1711 = vperm.xlu0 %1710, %v1200
    %v1712 = vpop.permute.xlu0 %1711
    %1713 = vset.pattern.permute.xlu0 3
    %1714 = vperm.xlu0 %1713, %v1201
    %v1715 = vpop.permute.xlu0 %1714
    %1716 = vset.pattern.permute.xlu0 3
    %1717 = vperm.xlu0 %1716, %v1202
    %v1718 = vpop.permute.xlu0 %1717
    %1719 = vset.pattern.permute.xlu0 3
    %1720 = vperm.xlu0 %1719, %v1203
    %v1721 = vpop.permute.xlu0 %1720
    %1722 = vset.pattern.permute.xlu0 3
    %1723 = vperm.xlu0 %1722, %v1204
    %v1724 = vpop.permute.xlu0 %1723
    %1725 = vset.pattern.permute.xlu0 3
    %1726 = vperm.xlu0 %1725, %v1205
    %v1727 = vpop.permute.xlu0 %1726
    %1728 = vset.pattern.permute.xlu0 3
    %1729 = vperm.xlu0 %1728, %v1206
    %v1730 = vpop.permute.xlu0 %1729
    %v1731 = vlaneseq
    %v1732 = vshrl.u32 %v1731, 7
    %v1733 = vsub.s32 %v499, %v1732
    %v1734 = vrot.slane %v1709, %v1733
    %v1735 = vlaneseq
    %v1736 = vshrl.u32 %v1735, 7
    %v1737 = vsub.s32 %v499, %v1736
    %v1738 = vrot.slane %v1712, %v1737
    %v1739 = vlaneseq
    %v1740 = vshrl.u32 %v1739, 7
    %v1741 = vsub.s32 %v499, %v1740
    %v1742 = vrot.slane %v1715, %v1741
    %v1743 = vlaneseq
    %v1744 = vshrl.u32 %v1743, 7
    %v1745 = vsub.s32 %v499, %v1744
    %v1746 = vrot.slane %v1718, %v1745
    %v1747 = vlaneseq
    %v1748 = vshrl.u32 %v1747, 7
    %v1749 = vsub.s32 %v499, %v1748
    %v1750 = vrot.slane %v1721, %v1749
    %v1751 = vlaneseq
    %v1752 = vshrl.u32 %v1751, 7
    %v1753 = vsub.s32 %v499, %v1752
    %v1754 = vrot.slane %v1724, %v1753
    %v1755 = vlaneseq
    %v1756 = vshrl.u32 %v1755, 7
    %v1757 = vsub.s32 %v499, %v1756
    %v1758 = vrot.slane %v1727, %v1757
    %v1759 = vlaneseq
    %v1760 = vshrl.u32 %v1759, 7
    %v1761 = vsub.s32 %v499, %v1760
    %v1762 = vrot.slane %v1730, %v1761
    %v1763 = vsel %vm532, %v1738, %v1734
    %v1764 = vsel %vm534, %v1742, %v1763
    %v1765 = vsel %vm536, %v1746, %v1764
    %v1766 = vsel %vm538, %v1750, %v1765
    %v1767 = vsel %vm540, %v1754, %v1766
    %v1768 = vsel %vm542, %v1758, %v1767
    %v1769 = vsel %vm544, %v1762, %v1768
    %v1771 = vadd.f32 %v1706, %v1769
    %vm1772 = vcmp.ge.f32.partialorder %v1771, 0.0
    %v1773 = vmul.f32 %v1771, 0.2
    %v1774 = vsel %vm1772, %v1771, %v1773
    %v1775 = vadd.f32 %v1774, %v1189
    %v1776 = vsel %vm552, %v1775, -inf
    %1777 = vmax.xlane.f32.xlu0 %v1776
    %v1778 = vpop.xlane.xlu0 %1777
    %v1779 = vsub.f32 %v1775, %v1778
    %v1780 = vmul.f32 %v1779, 1.442695
    %v1781 = vpow.pop %v1780
    %v1782 = vsel %vm552, %v1781, 0.0
    %1783 = vadd.xlane.f32.xlu0 %v1782
    %v1784 = vpop.xlane.xlu0 %1783
    %v1785 = vrcp.pop %v1784
    %v1786 = vmul.f32 %v1781, %v1785
    %1787 = vrot.lane.b32.xlu0 %v109, 104
    %v1788 = vpop.permute.xlu0 %1787
    %v1791 = vsel %vm552, %v1786, 0
    %1793 = vmatprep.subr.mxu0 0.0
    %1794 = vmatpush1.msra.mxu0 %v1788
    %1795 = vmatprep.subr.mxu0 0.0
    %1796 = vmatpush1.msra.mxu0 0.0
    %1797 = vmatprep.subr.mxu0 0.0
    %1798 = vmatpush1.msra.mxu0 0.0
    %1799 = vmatprep.subr.mxu0 0.0
    %1800 = vmatpush1.msra.mxu0 0.0
    %1801 = vmatprep.subr.mxu0 0.0
    %1802 = vmatpush1.msra.mxu0 0.0
    %1803 = vmatprep.subr.mxu0 0.0
    %1804 = vmatpush1.msra.mxu0 0.0
    %1805 = vmatprep.subr.mxu0 0.0
    %1806 = vmatpush1.msra.mxu0 0.0
    %1807 = vmatprep.subr.mxu0 0.0
    %1808 = vmatpush1.msra.mxu0 0.0
    %1809 = vmatprep.subr.mxu0 0.0
    %1810 = vmatpush1.msra.mxu0 0.0
    %1811 = vmatprep.subr.mxu0 0.0
    %1812 = vmatpush1.msra.mxu0 0.0
    %1813 = vmatprep.subr.mxu0 0.0
    %1814 = vmatpush1.msra.mxu0 0.0
    %1815 = vmatprep.subr.mxu0 0.0
    %1816 = vmatpush1.msra.mxu0 0.0
    %1817 = vmatprep.subr.mxu0 0.0
    %1818 = vmatpush1.msra.mxu0 0.0
    %1819 = vmatprep.subr.mxu0 0.0
    %1820 = vmatpush1.msra.mxu0 0.0
    %1821 = vmatprep.subr.mxu0 0.0
    %1822 = vmatpush1.msra.mxu0 0.0
    %1823 = vmatprep.subr.mxu0 0.0
    %1824 = vmatpush1.msra.mxu0 0.0
    %1825 = vmatprep.subr.mxu0 0.0
    %1826 = vmatpush1.msra.mxu0 0.0
    %1827 = vmatprep.subr.mxu0 0.0
    %1828 = vmatpush1.msra.mxu0 0.0
    %1829 = vmatprep.subr.mxu0 0.0
    %1830 = vmatpush1.msra.mxu0 0.0
    %1831 = vmatprep.subr.mxu0 0.0
    %1832 = vmatpush1.msra.mxu0 0.0
    %1833 = vmatprep.subr.mxu0 0.0
    %1834 = vmatpush1.msra.mxu0 0.0
    %1835 = vmatprep.subr.mxu0 0.0
    %1836 = vmatpush1.msra.mxu0 0.0
    %1837 = vmatprep.subr.mxu0 0.0
    %1838 = vmatpush1.msra.mxu0 0.0
    %1839 = vmatprep.subr.mxu0 0.0
    %1840 = vmatpush1.msra.mxu0 0.0
    %1841 = vmatprep.subr.mxu0 0.0
    %1842 = vmatpush1.msra.mxu0 0.0
    %1843 = vmatprep.subr.mxu0 0.0
    %1844 = vmatpush1.msra.mxu0 0.0
    %1845 = vmatprep.subr.mxu0 0.0
    %1846 = vmatpush1.msra.mxu0 0.0
    %1847 = vmatprep.subr.mxu0 0.0
    %1848 = vmatpush1.msra.mxu0 0.0
    %1849 = vmatprep.subr.mxu0 0.0
    %1850 = vmatpush1.msra.mxu0 0.0
    %1851 = vmatprep.subr.mxu0 0.0
    %1852 = vmatpush1.msra.mxu0 0.0
    %1853 = vmatprep.subr.mxu0 0.0
    %1854 = vmatpush1.msra.mxu0 0.0
    %1855 = vmatprep.subr.mxu0 0.0
    %1856 = vmatpush1.msra.mxu0 0.0
    %1857 = vmatprep.mubr.f32.mxu0 0.0
    %1858 = vmatmul.mubr.f32.gmra.mrb[0].mxu0 %v1791
    %v1859 = vpop.f32.mrb[0].mxu0
    %v1860 = vadd.f32 0.0, %v1859
    %v1861 = vpop.f32.mrb[0].mxu0
    %1862 = vdwg.mxu0
    %1864 = vrot.lane.b32.xlu0 %v1530, 8
    %v1865 = vpop.permute.xlu0 %1864
    %1868 = vrot.lane.b32.xlu0 %v1695, 16
    %v1869 = vpop.permute.xlu0 %1868
    %1872 = vrot.lane.b32.xlu0 %v1860, 24
    %v1873 = vpop.permute.xlu0 %1872
    %v1875 = vsel %vm552, %v1365, %v1865
    %v1876 = vsel %vm1145, %v1875, %v1869
    %v1877 = vsel %vm1147, %v1876, %v1873
    %s1878 = scalar_lea.vmem [#allocation2], 8
    %1879 = vst.msk [vmem:[%s1878] sm:$0xff] %vm30, %v1877
    // Predicated region
    $region26: #{tpu_custom_call.1} parent=1 // pred_check
      _
    $region27: #{tpu_custom_call.1} parent=1 // pred_check_branch
      %1881 = sbr.rel (0) target = $region29
    $region28: #{tpu_custom_call.1} parent=1 // pred_region
      %s1883 = ssub.s32 256, 256
      %1884 = vsyncadd [#allocation3], %s1883
      %s1885 = sshll.u32 [#allocation2], 4
      %s1886 = int_to_ptr.vmem [resolvable:$true] %s1885
      %1891 = dma.vmem_to_hbm [thread:$0]  %s1886, 256, %s6, [#allocation3], 128, 128, 8
    $region29: #{tpu_custom_call.1} parent=1 // pred_fallthru
      _
    // Predicated region
    $region30: #{tpu_custom_call.1} parent=1 // pred_check
      _
    $region31: #{tpu_custom_call.1} parent=1 // pred_check_branch
      %1893 = sbr.rel (0) target = $region33
    $region32: #{tpu_custom_call.1} parent=1 // pred_region
      %1894 = dma.done [#allocation3], 256
    $region33: #{tpu_custom_call.1} parent=1 // pred_fallthru
      _
    %1895 = vsyncpa [#allocation3], 1

</llo_original>
